<compile_context>
chip_gen: v5e
topology: v5e:2x2
jax: 0.10.0
libtpu: 0.0.40
codegen_flags: <defaults>
</compile_context>

<pallas_src>
import jax
import jax.numpy as jnp
import numpy as np
from jax.experimental import pallas as pl
from jax.experimental.pallas import tpu as pltpu

D_IN, D_OUT, NB = 32, 32, 3      # feature dims, #chained blocks
N_FOCUS = 8                      # "direct_focus": attention limited to first 8 features
NEG_BIG = -1e30                  # safe stand-in for -inf in masked softmax
TB = 256                         # rows per grid step (large block amortizes overhead)
OUT_LANES = 128                  # lane-dense padded output width (first D_OUT lanes meaningful)

# Packed weight-slab row layout (bf16, shape (WS_ROWS, 128)):
#   rows  0..31 : [ W1[0] | W1[1] | W1[2] | Wk ]        (everything that multiplies x)
#   rows 32..63 : [ W2[1] | W2[2] |  0   |  0  ]        (chained-state matmuls)
#   row   64    : [ b1[0] | b1[1] | b1[2] |  0  ]       (hidden biases)
#   row   65    : [ sum(b2)/(NB+1)+bo |  0 | 0 | 0 ]    (output bias)
#   rows 66..71 : zero padding (sublane alignment)
WS_ROWS = 72


def xnet_kernel(x_ref, ws_ref, wout_ref, out_ref):
    x = x_ref[...]                                           # bf16 (TB, D_IN)
    wx = ws_ref[0:D_IN, :]                                   # bf16 (32, 128)
    w2a = ws_ref[D_IN:2 * D_IN, 0:D_IN]                      # bf16 (32, 32)
    w2b = ws_ref[D_IN:2 * D_IN, D_IN:2 * D_IN]               # bf16 (32, 32)
    b1_row = ws_ref[64:65, :].astype(jnp.float32)            # (1, 128)
    bfin_row = ws_ref[65:66, :].astype(jnp.float32)          # (1, 128), lanes >= D_OUT are 0

    # ---- one lane-dense MXU pass for everything that multiplies x ----
    xw = jnp.dot(x, wx, preferred_element_type=jnp.float32)  # (TB, 128) f32
    xw1 = xw[:, : NB * D_IN] + b1_row[:, : NB * D_IN]        # x@W1[b] + b1[b], all blocks
    scores = xw[:, NB * D_IN:]                                # x@Wk  (TB, D_IN)

    # ---- chained X blocks; first block's y_prev is exactly 0 -> skip its W2 matmul ----
    h0 = jnp.tanh(xw1[:, 0:D_IN])
    h1 = jnp.tanh(xw1[:, D_IN:2 * D_IN]
                  + jnp.dot(h0.astype(jnp.bfloat16), w2a, preferred_element_type=jnp.float32))
    h2 = jnp.tanh(xw1[:, 2 * D_IN:3 * D_IN]
                  + jnp.dot(h1.astype(jnp.bfloat16), w2b, preferred_element_type=jnp.float32))

    # ---- LimitedAttentionLayer(x): static compile-time focus mask, f32 math ----
    focus = jax.lax.broadcasted_iota(jnp.int32, scores.shape, 1) < N_FOCUS
    scores = jnp.where(focus, scores, NEG_BIG)
    scores = scores - jnp.max(scores, axis=-1, keepdims=True)
    e = jnp.exp(scores)
    attn = e * pl.reciprocal(jnp.sum(e, axis=-1, keepdims=True), approx=True)
    weighted = attn * x.astype(jnp.float32)                   # attn is exactly 0 off-focus

    # ---- single fused output matmul, lane-dense (TB,128) store ----
    # wout = vstack([W3[0]*s, W3[1]*s, W3[2]*s, Wo]) zero-padded to 128 lanes, s = 1/(NB+1)
    lhs = jnp.concatenate([h0, h1, h2, weighted], axis=1).astype(jnp.bfloat16)  # (TB, 128)
    out = jnp.dot(lhs, wout_ref[...], preferred_element_type=jnp.float32) + bfin_row
    out_ref[...] = out


def pack_params(params):
    """Fold scaling/bias sums and pack all weights into two bf16 slabs. Call ONCE."""
    w1, w2, b1, w3, b2, wk, wo, bo, _mask = params
    s = 1.0 / float(NB + 1)
    ws = jnp.zeros((WS_ROWS, 4 * D_IN), jnp.float32)
    ws = ws.at[0:D_IN, :].set(jnp.concatenate([w1[b] for b in range(NB)] + [wk], axis=1))
    ws = ws.at[D_IN:2 * D_IN, 0:D_IN].set(w2[1])
    ws = ws.at[D_IN:2 * D_IN, D_IN:2 * D_IN].set(w2[2])
    ws = ws.at[64:65, 0:NB * D_IN].set(jnp.concatenate([b1[b] for b in range(NB)], axis=1))
    ws = ws.at[65:66, 0:D_OUT].set(jnp.sum(b2, axis=0) * s + bo)
    wout = jnp.zeros((4 * D_IN, OUT_LANES), jnp.float32)
    wout = wout.at[:, 0:D_OUT].set(
        jnp.concatenate([w3[b] * s for b in range(NB)] + [wo], axis=0))
    return ws.astype(jnp.bfloat16), wout.astype(jnp.bfloat16)


def _xnet_forward(x, ws, wout):
    batch = x.shape[0]
    batch_p = TB * pl.cdiv(batch, TB)
    xb = x.astype(jnp.bfloat16)
    if batch_p != batch:
        xb = jnp.pad(xb, ((0, batch_p - batch), (0, 0)))
    out = pl.pallas_call(
        xnet_kernel,
        out_shape=jax.ShapeDtypeStruct((batch_p, OUT_LANES), jnp.float32),
        grid=(batch_p // TB,),
        in_specs=[
            pl.BlockSpec((TB, D_IN), lambda i: (i, 0)),                 # x row blocks
            pl.BlockSpec((WS_ROWS, 4 * D_IN), lambda i: (0, 0)),        # weight/bias slab (resident)
            pl.BlockSpec((4 * D_IN, OUT_LANES), lambda i: (0, 0)),      # output weights (resident)
        ],
        out_specs=pl.BlockSpec((TB, OUT_LANES), lambda i: (i, 0)),
        compiler_params=pltpu.CompilerParams(dimension_semantics=("parallel",)),
    )(xb, ws, wout)
    return out[:batch, :D_OUT]


xnet_forward = jax.jit(_xnet_forward)


def xnet_reference(x, params):
    """Plain-JAX f32 reference mirroring the original (unfused) module semantics."""
    w1, w2, b1, w3, b2, wk, wo, bo, mask = params
    y_prev = jnp.zeros_like(x)
    y_final_sum = jnp.zeros((x.shape[0], D_OUT), jnp.float32)
    for b in range(NB):
        h = jnp.tanh(x @ w1[b] + y_prev @ w2[b] + b1[b])
        y_final_sum = y_final_sum + (h @ w3[b] + b2[b])
        y_prev = h
    y_final_avg = y_final_sum / float(NB + 1)
    scores = x @ wk
    scores = jnp.where(mask > 0.0, scores, NEG_BIG)
    scores = scores - jnp.max(scores, axis=-1, keepdims=True)
    e = jnp.exp(scores)
    attn = e / jnp.sum(e, axis=-1, keepdims=True)
    y_direct = (attn * x * mask) @ wo + bo
    return y_final_avg + y_direct


def make_params(key):
    ks = jax.random.split(key, 9)
    w1 = 0.1 * jax.random.normal(ks[0], (NB, D_IN, D_IN), jnp.float32)
    w2 = 0.1 * jax.random.normal(ks[1], (NB, D_IN, D_IN), jnp.float32)
    b1 = 0.1 * jax.random.normal(ks[2], (NB, 1, D_IN), jnp.float32)
    w3 = 0.1 * jax.random.normal(ks[3], (NB, D_IN, D_OUT), jnp.float32)
    b2 = 0.1 * jax.random.normal(ks[4], (NB, 1, D_OUT), jnp.float32)
    wk = 0.1 * jax.random.normal(ks[5], (D_IN, D_IN), jnp.float32)
    wo = 0.1 * jax.random.normal(ks[6], (D_IN, D_OUT), jnp.float32)
    bo = 0.1 * jax.random.normal(ks[7], (1, D_OUT), jnp.float32)
    mask = jnp.zeros((1, D_IN), jnp.float32).at[:, :N_FOCUS].set(1.0)
    return (w1, w2, b1, w3, b2, wk, wo, bo, mask)


if __name__ == "__main__":
    key = jax.random.PRNGKey(0)
    kx, kp = jax.random.split(key)
    BATCH = 512                               # 2 grid steps of TB=256 rows
    x = jax.random.normal(kx, (BATCH, D_IN), jnp.float32)
    params = make_params(kp)

    # Packing is hoisted out of the per-call path: done once for static weights.
    ws, wout = pack_params(params)
    ws = jax.block_until_ready(ws)
    wout = jax.block_until_ready(wout)

    out = jax.block_until_ready(xnet_forward(x, ws, wout))
    ref = jax.block_until_ready(xnet_reference(x, params))

    assert out.shape == (BATCH, D_OUT), out.shape
    # bf16 weights/activations in the kernel vs f32 reference -> loose tolerance.
    np.testing.assert_allclose(np.asarray(out), np.asarray(ref), rtol=3e-2, atol=3e-2)
    print("KERNEL_OK")
</pallas_src>

<mosaic_0001>
module attributes {stable_mosaic.version = 11 : i64} {
  func.func @xnet_kernel(%arg0: i32, %arg1: memref<256x32xbf16, #tpu.memory_space<vmem>>, %arg2: memref<72x128xbf16, #tpu.memory_space<vmem>>, %arg3: memref<128x128xbf16, #tpu.memory_space<vmem>>, %arg4: memref<256x128xf32, #tpu.memory_space<vmem>>) attributes {dimension_semantics = [#tpu.dimension_semantics<parallel>], iteration_bounds = array<i64: 2>, scalar_prefetch = 0 : i64, scratch_operands = 0 : i64, tpu.core_type = #tpu.core_type<tc>, window_params = [{transform_indices = @transform_0, window_bounds = array<i64: 256, 32>}, {pipeline_mode = #tpu.pipeline_mode<synchronous>, transform_indices = @transform_1, window_bounds = array<i64: 72, 128>}, {pipeline_mode = #tpu.pipeline_mode<synchronous>, transform_indices = @transform_2, window_bounds = array<i64: 128, 128>}, {transform_indices = @transform_3, window_bounds = array<i64: 256, 128>}]} {
    %c0 = arith.constant 0 : index
    %c0_0 = arith.constant 0 : index
    %0 = vector.load %arg1[%c0, %c0_0] : memref<256x32xbf16, #tpu.memory_space<vmem>>, vector<256x32xbf16>
    %c0_1 = arith.constant 0 : index
    %c0_2 = arith.constant 0 : index
    %1 = vector.load %arg2[%c0_1, %c0_2] : memref<72x128xbf16, #tpu.memory_space<vmem>>, vector<32x128xbf16>
    %c32 = arith.constant 32 : index
    %c0_3 = arith.constant 0 : index
    %2 = vector.load %arg2[%c32, %c0_3] : memref<72x128xbf16, #tpu.memory_space<vmem>>, vector<32x32xbf16>
    %c32_4 = arith.constant 32 : index
    %c32_5 = arith.constant 32 : index
    %3 = vector.load %arg2[%c32_4, %c32_5] : memref<72x128xbf16, #tpu.memory_space<vmem>>, vector<32x32xbf16>
    %c64 = arith.constant 64 : index
    %c0_6 = arith.constant 0 : index
    %4 = vector.load %arg2[%c64, %c0_6] : memref<72x128xbf16, #tpu.memory_space<vmem>>, vector<1x128xbf16>
    %5 = arith.extf %4 : vector<1x128xbf16> to vector<1x128xf32>
    %c65 = arith.constant 65 : index
    %c0_7 = arith.constant 0 : index
    %6 = vector.load %arg2[%c65, %c0_7] : memref<72x128xbf16, #tpu.memory_space<vmem>>, vector<1x128xbf16>
    %7 = arith.extf %6 : vector<1x128xbf16> to vector<1x128xf32>
    %cst = arith.constant dense<0.000000e+00> : vector<256x128xf32>
    %8 = tpu.matmul %0, %1, %cst {dimension_numbers = #tpu.dot_dimension_numbers<[1], [0], [0], [1], [0, 0, 1, 1], [], []>} : vector<256x32xbf16>, vector<32x128xbf16>, vector<256x128xf32> -> vector<256x128xf32>
    %9 = vector.extract_strided_slice %8 {offsets = [0, 0], sizes = [256, 96], strides = [1, 1]} : vector<256x128xf32> to vector<256x96xf32>
    %10 = vector.extract_strided_slice %5 {offsets = [0, 0], sizes = [1, 96], strides = [1, 1]} : vector<1x128xf32> to vector<1x96xf32>
    %11 = vector.broadcast %10 : vector<1x96xf32> to vector<256x96xf32>
    %12 = arith.addf %9, %11 : vector<256x96xf32>
    %13 = vector.extract_strided_slice %8 {offsets = [0, 96], sizes = [256, 32], strides = [1, 1]} : vector<256x128xf32> to vector<256x32xf32>
    %14 = vector.extract_strided_slice %12 {offsets = [0, 0], sizes = [256, 32], strides = [1, 1]} : vector<256x96xf32> to vector<256x32xf32>
    %15 = math.tanh %14 : vector<256x32xf32>
    %16 = vector.extract_strided_slice %12 {offsets = [0, 32], sizes = [256, 32], strides = [1, 1]} : vector<256x96xf32> to vector<256x32xf32>
    %17 = arith.truncf %15 : vector<256x32xf32> to vector<256x32xbf16>
    %cst_8 = arith.constant dense<0.000000e+00> : vector<256x32xf32>
    %18 = tpu.matmul %17, %2, %cst_8 {dimension_numbers = #tpu.dot_dimension_numbers<[1], [0], [0], [1], [0, 0, 1, 1], [], []>} : vector<256x32xbf16>, vector<32x32xbf16>, vector<256x32xf32> -> vector<256x32xf32>
    %19 = arith.addf %16, %18 : vector<256x32xf32>
    %20 = math.tanh %19 : vector<256x32xf32>
    %21 = vector.extract_strided_slice %12 {offsets = [0, 64], sizes = [256, 32], strides = [1, 1]} : vector<256x96xf32> to vector<256x32xf32>
    %22 = arith.truncf %20 : vector<256x32xf32> to vector<256x32xbf16>
    %cst_9 = arith.constant dense<0.000000e+00> : vector<256x32xf32>
    %23 = tpu.matmul %22, %3, %cst_9 {dimension_numbers = #tpu.dot_dimension_numbers<[1], [0], [0], [1], [0, 0, 1, 1], [], []>} : vector<256x32xbf16>, vector<32x32xbf16>, vector<256x32xf32> -> vector<256x32xf32>
    %24 = arith.addf %21, %23 : vector<256x32xf32>
    %25 = math.tanh %24 : vector<256x32xf32>
    %26 = tpu.iota {dimensions = array<i32: 1>} : vector<256x32xi32>
    %c8_i32 = arith.constant 8 : i32
    %27 = vector.broadcast %c8_i32 : i32 to vector<256x32xi32>
    %28 = arith.cmpi slt, %26, %27 : vector<256x32xi32>
    %cst_10 = arith.constant -1.000000e+30 : f32
    %29 = vector.broadcast %cst_10 : f32 to vector<256x32xf32>
    %30 = arith.select %28, %13, %29 : vector<256x32xi1>, vector<256x32xf32>
    %cst_11 = arith.constant dense<0xFF800000> : vector<256xf32>
    %31 = vector.multi_reduction <maximumf>, %30, %cst_11 [1] : vector<256x32xf32> to vector<256xf32>
    %32 = vector.shape_cast %31 : vector<256xf32> to vector<256x1xf32>
    %33 = vector.broadcast %32 : vector<256x1xf32> to vector<256x32xf32>
    %34 = arith.subf %30, %33 : vector<256x32xf32>
    %35 = math.exp %34 : vector<256x32xf32>
    %cst_12 = arith.constant dense<0.000000e+00> : vector<256xf32>
    %36 = vector.multi_reduction <add>, %35, %cst_12 [1] : vector<256x32xf32> to vector<256xf32>
    %37 = vector.shape_cast %36 : vector<256xf32> to vector<256x1xf32>
    %38 = tpu.reciprocal %37 {approx = true} : vector<256x1xf32> -> vector<256x1xf32>
    %39 = vector.broadcast %38 : vector<256x1xf32> to vector<256x32xf32>
    %40 = arith.mulf %35, %39 : vector<256x32xf32>
    %41 = arith.extf %0 : vector<256x32xbf16> to vector<256x32xf32>
    %42 = arith.mulf %40, %41 : vector<256x32xf32>
    %43 = tpu.concatenate %15, %20, %25, %42 in 1 : vector<256x32xf32>, vector<256x32xf32>, vector<256x32xf32>, vector<256x32xf32> -> vector<256x128xf32>
    %44 = arith.truncf %43 : vector<256x128xf32> to vector<256x128xbf16>
    %c0_13 = arith.constant 0 : index
    %c0_14 = arith.constant 0 : index
    %45 = vector.load %arg3[%c0_13, %c0_14] : memref<128x128xbf16, #tpu.memory_space<vmem>>, vector<128x128xbf16>
    %cst_15 = arith.constant dense<0.000000e+00> : vector<256x128xf32>
    %46 = tpu.matmul %44, %45, %cst_15 {dimension_numbers = #tpu.dot_dimension_numbers<[1], [0], [0], [1], [0, 0, 1, 1], [], []>} : vector<256x128xbf16>, vector<128x128xbf16>, vector<256x128xf32> -> vector<256x128xf32>
    %47 = vector.broadcast %7 : vector<1x128xf32> to vector<256x128xf32>
    %48 = arith.addf %46, %47 : vector<256x128xf32>
    %c0_16 = arith.constant 0 : index
    %c0_17 = arith.constant 0 : index
    %49 = vector.load %arg4[%c0_16, %c0_17] : memref<256x128xf32, #tpu.memory_space<vmem>>, vector<256x128xf32>
    tpu.vector_store %arg4[%c0_16, %c0_17], %48 {strides = array<i32>} : memref<256x128xf32, #tpu.memory_space<vmem>>, vector<256x128xf32>,
    return
  }
  func.func @transform_0(%arg0: i32) -> (i32, i32) {
    %c0_i32 = arith.constant 0 : i32
    %c0_i32_0 = arith.constant 0 : i32
    return %arg0, %c0_i32 : i32, i32
  }
  func.func @transform_1(%arg0: i32) -> (i32, i32) {
    %c0_i32 = arith.constant 0 : i32
    %c0_i32_0 = arith.constant 0 : i32
    %c0_i32_1 = arith.constant 0 : i32
    return %c0_i32, %c0_i32_0 : i32, i32
  }
  func.func @transform_2(%arg0: i32) -> (i32, i32) {
    %c0_i32 = arith.constant 0 : i32
    %c0_i32_0 = arith.constant 0 : i32
    %c0_i32_1 = arith.constant 0 : i32
    return %c0_i32, %c0_i32_0 : i32, i32
  }
  func.func @transform_3(%arg0: i32) -> (i32, i32) {
    %c0_i32 = arith.constant 0 : i32
    %c0_i32_0 = arith.constant 0 : i32
    return %arg0, %c0_i32 : i32, i32
  }
}

</mosaic_0001>

<llo_original>
// kernel: _xnet_forward.1
$region0: #{_xnet_forward.1}
  #allocation0 [shape = 'u32[]', space=smem, size = 0x4, offset = 0x4, fixed_abs, tag = 'smem constant byte address 0x4 - core index']
  #allocation1 [shape = 'u32[72,128]{1,0:T(1,128)}', space=vmem, size = 0x9000, scoped, tag = 'internal scratch']
  %s0 = inlined_call_operand.vmem [shape: bf16[512,32], index: 0, kind: input, shape index: {}]
  %s1 = inlined_call_operand.vmem [shape: bf16[72,128], index: 1, kind: input, shape index: {}]
  %s2 = inlined_call_operand.vmem [shape: bf16[128,128], index: 2, kind: input, shape index: {}]
  %s3 = inlined_call_operand.vmem [shape: f32[512,128], index: 3, kind: output, shape index: {}]
  %s4 = sld [smem:[#allocation0]]
  $region45: #{_xnet_forward.1} parent=0
    _
  %s6 = ssub.s32 1, %s4
  %s7 = scalar_select 0, %s6, %s4
  loop: start=0, step=1, limit=4
  $region2: #{_xnet_forward.1} parent=0 // loop_pre_header
    _
  $region3: #{_xnet_forward.1} parent=0 // loop_header
    %s9 = sphi 0, %s13
    %p10 = scmp.ge.s32.totalorder %s9, 4
    %s19 = sphi 0, %s21
    %s22 = sphi 0, %s19
    %s23 = sphi 0, %s22
    %s39 = sphi 0, %s23
    %s43 = sphi 0, %s43
    %s45 = sphi 0, %s43
    %s46 = sphi 0, %s45
    %s60 = sphi 0, %s46
    %s64 = sphi 0, %s64
    %s66 = sphi 0, %s64
    %s67 = sphi 0, %s66
    %s81 = sphi 0, %s67
    %s87 = sphi 0, %s89
    %s90 = sphi 0, %s87
    %s91 = sphi 0, %s90
    %s107 = sphi 0, %s91
  $region4: #{_xnet_forward.1} parent=0 // loop_header_branch
    %12 = sbr.rel (%p10) target = $region8
  $region5: #{_xnet_forward.1} parent=0 // loop_body
    %s14 = ssub.s32 %s9, 1
    %s15 = ssub.s32 %s9, 2
    %s16 = sadd.s32 %s9, 1
    %s17 = ssub.s32 %s9, %s16
    %p18 = scmp.eq.s32.totalorder %s17, 0
    %s20 = sadd.s32 %s19, 1
    %s21 = scalar_select %p18, %s19, %s20
    %p24 = pneg %p18
    %p25 = scmp.eq.s32.totalorder %s9, 1
    %p26 = por %p24, %p25
    %p27 = scmp.ne.s32.totalorder %s19, %s22
    %p28 = scmp.eq.s32.totalorder %s9, 0
    %p29 = por %p27, %p28
    %p30 = scmp.ne.s32.totalorder %s19, %s22
    %p31 = scmp.eq.s32.totalorder %s14, 1
    %p32 = por %p30, %p31
    %p33 = scmp.ne.s32.totalorder %s22, %s23
    %p34 = scmp.eq.s32.totalorder %s14, 0
    %p35 = por %p33, %p34
    %p36 = scmp.ne.s32.totalorder %s22, %s23
    %p37 = scmp.eq.s32.totalorder %s15, 1
    %p38 = por %p36, %p37
    %p40 = scmp.ne.s32.totalorder %s23, %s39
    %p41 = scmp.eq.s32.totalorder %s15, 0
    %p42 = por %p40, %p41
    %s44 = sadd.s32 %s43, 1
    %p47 = scmp.eq.s32.totalorder %s9, 1
    %p48 = scmp.ne.s32.totalorder %s43, %s45
    %p49 = scmp.eq.s32.totalorder %s9, 0
    %p50 = por %p48, %p49
    %p51 = scmp.ne.s32.totalorder %s43, %s45
    %p52 = scmp.eq.s32.totalorder %s14, 1
    %p53 = por %p51, %p52
    %p54 = scmp.ne.s32.totalorder %s45, %s46
    %p55 = scmp.eq.s32.totalorder %s14, 0
    %p56 = por %p54, %p55
    %p57 = scmp.ne.s32.totalorder %s45, %s46
    %p58 = scmp.eq.s32.totalorder %s15, 1
    %p59 = por %p57, %p58
    %p61 = scmp.ne.s32.totalorder %s46, %s60
    %p62 = scmp.eq.s32.totalorder %s15, 0
    %p63 = por %p61, %p62
    %s65 = sadd.s32 %s64, 1
    %p68 = scmp.eq.s32.totalorder %s9, 1
    %p69 = scmp.ne.s32.totalorder %s64, %s66
    %p70 = scmp.eq.s32.totalorder %s9, 0
    %p71 = por %p69, %p70
    %p72 = scmp.ne.s32.totalorder %s64, %s66
    %p73 = scmp.eq.s32.totalorder %s14, 1
    %p74 = por %p72, %p73
    %p75 = scmp.ne.s32.totalorder %s66, %s67
    %p76 = scmp.eq.s32.totalorder %s14, 0
    %p77 = por %p75, %p76
    %p78 = scmp.ne.s32.totalorder %s66, %s67
    %p79 = scmp.eq.s32.totalorder %s15, 1
    %p80 = por %p78, %p79
    %p82 = scmp.ne.s32.totalorder %s67, %s81
    %p83 = scmp.eq.s32.totalorder %s15, 0
    %p84 = por %p82, %p83
    %s85 = ssub.s32 %s9, %s16
    %p86 = scmp.eq.s32.totalorder %s85, 0
    %s88 = sadd.s32 %s87, 1
    %s89 = scalar_select %p86, %s87, %s88
    %p92 = pneg %p86
    %p93 = scmp.eq.s32.totalorder %s9, 1
    %p94 = por %p92, %p93
    %p95 = scmp.ne.s32.totalorder %s87, %s90
    %p96 = scmp.eq.s32.totalorder %s9, 0
    %p97 = por %p95, %p96
    %p98 = scmp.ne.s32.totalorder %s87, %s90
    %p99 = scmp.eq.s32.totalorder %s14, 1
    %p100 = por %p98, %p99
    %p101 = scmp.ne.s32.totalorder %s90, %s91
    %p102 = scmp.eq.s32.totalorder %s14, 0
    %p103 = por %p101, %p102
    %p104 = scmp.ne.s32.totalorder %s90, %s91
    %p105 = scmp.eq.s32.totalorder %s15, 1
    %p106 = por %p104, %p105
    %p108 = scmp.ne.s32.totalorder %s91, %s107
    %p109 = scmp.eq.s32.totalorder %s15, 0
    %p110 = por %p108, %p109
    %p111 = scmp.le.s32.totalorder 1, %s9
    %p112 = scmp.lt.s32.totalorder %s9, 3
    %p113 = pnand %p111, %p112
    %p114 = pneg %p113
    // Predicated region
    $region9: #{_xnet_forward.1} parent=5 // pred_check
      _
    $region10: #{_xnet_forward.1} parent=5 // pred_check_branch
      %116 = sbr.rel (%p113) target = $region12
    $region11: #{_xnet_forward.1} parent=5 // pred_region
      %s117 = ssub.s32 %s9, 1
      // Predicated region
      $region13: #{_xnet_forward.1} parent=11 // pred_check
        %p118 = pneg %p56
      $region14: #{_xnet_forward.1} parent=11 // pred_check_branch
        %120 = sbr.rel (%p118) target = $region16
      $region15: #{_xnet_forward.1} parent=11 // pred_region
        _
      $region16: #{_xnet_forward.1} parent=11 // pred_fallthru
        _
      // Predicated region
      $region17: #{_xnet_forward.1} parent=11 // pred_check
        %p121 = pneg %p77
      $region18: #{_xnet_forward.1} parent=11 // pred_check_branch
        %123 = sbr.rel (%p121) target = $region20
      $region19: #{_xnet_forward.1} parent=11 // pred_region
        _
      $region20: #{_xnet_forward.1} parent=11 // pred_fallthru
        _
    $region12: #{_xnet_forward.1} parent=5 // pred_fallthru
      _
    %p124 = scmp.lt.s32.totalorder %s9, 2
    // Predicated region
    $region21: #{_xnet_forward.1} parent=5 // pred_check
      %p125 = pneg %p124
    $region22: #{_xnet_forward.1} parent=5 // pred_check_branch
      %127 = sbr.rel (%p125) target = $region24
    $region23: #{_xnet_forward.1} parent=5 // pred_region
      // Predicated region
      $region25: #{_xnet_forward.1} parent=23 // pred_check
        %p128 = pneg %p29
      $region26: #{_xnet_forward.1} parent=23 // pred_check_branch
        %130 = sbr.rel (%p128) target = $region28
      $region27: #{_xnet_forward.1} parent=23 // pred_region
        %s131 = smul.u32 32, %s9
        %p132 = scmp.lt.s32.totalorder %s131, 63
        %s133 = scalar_select %p132, %s131, 63
        %s134 = smul.addr %s133, 4
        %s135 = scalar_lea.vmem %s0, %s134
        %s136 = smul.u32 32, %s9
      $region28: #{_xnet_forward.1} parent=23 // pred_fallthru
        _
    $region24: #{_xnet_forward.1} parent=5 // pred_fallthru
      _
    %p137 = scmp.le.s32.totalorder 1, %s9
    %p138 = scmp.lt.s32.totalorder %s9, 3
    %p139 = pnand %p137, %p138
    %p140 = pneg %p139
    // Predicated region
    $region29: #{_xnet_forward.1} parent=5 // pred_check
      _
    $region30: #{_xnet_forward.1} parent=5 // pred_check_branch
      %142 = sbr.rel (%p139) target = $region32
    $region31: #{_xnet_forward.1} parent=5 // pred_region
      %s143 = ssub.s32 %s9, 1
      %s144 = smul.u32 32, %s14
      %p145 = scmp.lt.s32.totalorder %s144, 63
      %s146 = scalar_select %p145, %s144, 63
      %s147 = smul.addr %s146, 4
      %s148 = scalar_lea.vmem %s0, %s147
      %p149 = pneg %p35
      %p150 = pneg %p32
      %p151 = pneg %p56
      %p152 = pneg %p53
      %p153 = pneg %p77
      %p154 = pneg %p74
      %p155 = pneg %p103
      %p156 = pneg %p100
      %s157 = smul.u32 32, %s14
      %p158 = scmp.lt.s32.totalorder %s157, 63
      %s159 = scalar_select %p158, %s157, 63
      %s160 = smul.addr %s159, 8
      %s161 = scalar_lea.vmem %s3, %s160
      %s162 = smul.u32 32, %s14
      %p163 = scmp.lt.s32.totalorder %s162, 63
      %s164 = scalar_select %p163, %s162, 63
      %s165 = smul.addr %s164, 4
      %s166 = scalar_lea.vmem %s0, %s165
      %s167 = smul.u32 32, %s14
      %s168 = smul.u32 32, %s14
      %p169 = scmp.lt.s32.totalorder %s168, 63
      %s170 = scalar_select %p169, %s168, 63
      %s171 = smul.addr %s170, 8
      %s172 = scalar_lea.vmem %s3, %s171
      %s173 = smul.u32 32, %s14
      %v175 = vld [vmem:[%s166] sm:$0xf]
      %v176 = vld [vmem:[%s166 + $0x4] sm:$0xf]
      %v177 = vld [vmem:[%s166 + $0x8] sm:$0xf]
      %v178 = vld [vmem:[%s166 + $0xc] sm:$0xf]
      %v179 = vld [vmem:[%s166 + $0x10] sm:$0xf]
      %v180 = vld [vmem:[%s166 + $0x14] sm:$0xf]
      %v181 = vld [vmem:[%s166 + $0x18] sm:$0xf]
      %v182 = vld [vmem:[%s166 + $0x1c] sm:$0xf]
      %v183 = vld [vmem:[%s166 + $0x20] sm:$0xf]
      %v184 = vld [vmem:[%s166 + $0x24] sm:$0xf]
      %v185 = vld [vmem:[%s166 + $0x28] sm:$0xf]
      %v186 = vld [vmem:[%s166 + $0x2c] sm:$0xf]
      %v187 = vld [vmem:[%s166 + $0x30] sm:$0xf]
      %v188 = vld [vmem:[%s166 + $0x34] sm:$0xf]
      %v189 = vld [vmem:[%s166 + $0x38] sm:$0xf]
      %v190 = vld [vmem:[%s166 + $0x3c] sm:$0xf]
      %v191 = vld [vmem:[%s166 + $0x40] sm:$0xf]
      %v192 = vld [vmem:[%s166 + $0x44] sm:$0xf]
      %v193 = vld [vmem:[%s166 + $0x48] sm:$0xf]
      %v194 = vld [vmem:[%s166 + $0x4c] sm:$0xf]
      %v195 = vld [vmem:[%s166 + $0x50] sm:$0xf]
      %v196 = vld [vmem:[%s166 + $0x54] sm:$0xf]
      %v197 = vld [vmem:[%s166 + $0x58] sm:$0xf]
      %v198 = vld [vmem:[%s166 + $0x5c] sm:$0xf]
      %v199 = vld [vmem:[%s166 + $0x60] sm:$0xf]
      %v200 = vld [vmem:[%s166 + $0x64] sm:$0xf]
      %v201 = vld [vmem:[%s166 + $0x68] sm:$0xf]
      %v202 = vld [vmem:[%s166 + $0x6c] sm:$0xf]
      %v203 = vld [vmem:[%s166 + $0x70] sm:$0xf]
      %v204 = vld [vmem:[%s166 + $0x74] sm:$0xf]
      %v205 = vld [vmem:[%s166 + $0x78] sm:$0xf]
      %v206 = vld [vmem:[%s166 + $0x7c] sm:$0xf]
      %v207 = vld [vmem:[%s1] sm:$0xf]
      %v208 = vld [vmem:[%s1 + $0x4] sm:$0xf]
      %v209 = vld [vmem:[%s1 + $0x8] sm:$0xf]
      %v210 = vld [vmem:[%s1 + $0xc] sm:$0xf]
      %v211 = vld [vmem:[%s1 + $0x10] sm:$0xf]
      %v212 = vld [vmem:[%s1 + $0x14] sm:$0xf]
      %v213 = vld [vmem:[%s1 + $0x18] sm:$0xf]
      %v214 = vld [vmem:[%s1 + $0x1c] sm:$0xf]
      %v215 = vld [vmem:[%s1 + $0x20] sm:$0x1]
      %v216 = vunpack.c.l.bf16 %v215
      %v249 = vunpack.c.l.b16 %v175
      %v250 = vunpack.c.l.b16 %v176
      %v251 = vunpack.c.l.b16 %v177
      %v252 = vunpack.c.l.b16 %v178
      %v253 = vunpack.c.l.b16 %v179
      %v254 = vunpack.c.l.b16 %v180
      %v255 = vunpack.c.l.b16 %v181
      %v256 = vunpack.c.l.b16 %v182
      %v257 = vunpack.c.l.b16 %v183
      %v258 = vunpack.c.l.b16 %v184
      %v259 = vunpack.c.l.b16 %v185
      %v260 = vunpack.c.l.b16 %v186
      %v261 = vunpack.c.l.b16 %v187
      %v262 = vunpack.c.l.b16 %v188
      %v263 = vunpack.c.l.b16 %v189
      %v264 = vunpack.c.l.b16 %v190
      %v265 = vunpack.c.l.b16 %v191
      %v266 = vunpack.c.l.b16 %v192
      %v267 = vunpack.c.l.b16 %v193
      %v268 = vunpack.c.l.b16 %v194
      %v269 = vunpack.c.l.b16 %v195
      %v270 = vunpack.c.l.b16 %v196
      %v271 = vunpack.c.l.b16 %v197
      %v272 = vunpack.c.l.b16 %v198
      %v273 = vunpack.c.l.b16 %v199
      %v274 = vunpack.c.l.b16 %v200
      %v275 = vunpack.c.l.b16 %v201
      %v276 = vunpack.c.l.b16 %v202
      %v277 = vunpack.c.l.b16 %v203
      %v278 = vunpack.c.l.b16 %v204
      %v279 = vunpack.c.l.b16 %v205
      %v280 = vunpack.c.l.b16 %v206
      %v281 = vpack.c.b16 %v250, %v249
      %v282 = vpack.c.b16 %v252, %v251
      %v283 = vpack.c.b16 %v254, %v253
      %v284 = vpack.c.b16 %v256, %v255
      %v285 = vpack.c.b16 %v258, %v257
      %v286 = vpack.c.b16 %v260, %v259
      %v287 = vpack.c.b16 %v262, %v261
      %v288 = vpack.c.b16 %v264, %v263
      %v289 = vpack.c.b16 %v266, %v265
      %v290 = vpack.c.b16 %v268, %v267
      %v291 = vpack.c.b16 %v270, %v269
      %v292 = vpack.c.b16 %v272, %v271
      %v293 = vpack.c.b16 %v274, %v273
      %v294 = vpack.c.b16 %v276, %v275
      %v295 = vpack.c.b16 %v278, %v277
      %v296 = vpack.c.b16 %v280, %v279
      %v301 = vunpack.c.l.b16 %v207
      %v302 = vunpack.c.l.b16 %v208
      %v303 = vunpack.c.l.b16 %v209
      %v304 = vunpack.c.l.b16 %v210
      %v305 = vpack.c.b16 %v302, %v301
      %v306 = vpack.c.b16 %v304, %v303
      %vm309 = vcmask 261120
      %v311 = vsel %vm309, %v281, 0
      %v314 = vsel %vm309, %v282, 0
      %v317 = vsel %vm309, %v283, 0
      %v320 = vsel %vm309, %v284, 0
      %v323 = vsel %vm309, %v285, 0
      %v326 = vsel %vm309, %v286, 0
      %v329 = vsel %vm309, %v287, 0
      %v332 = vsel %vm309, %v288, 0
      %v335 = vsel %vm309, %v289, 0
      %v338 = vsel %vm309, %v290, 0
      %v341 = vsel %vm309, %v291, 0
      %v344 = vsel %vm309, %v292, 0
      %v347 = vsel %vm309, %v293, 0
      %v350 = vsel %vm309, %v294, 0
      %v353 = vsel %vm309, %v295, 0
      %v356 = vsel %vm309, %v296, 0
      %358 = vmatpush.bf16.msra.mxu0 0
      %359 = vmatpush.bf16.msra.mxu0 0
      %360 = vmatpush.bf16.msra.mxu0 0
      %361 = vmatpush.bf16.msra.mxu0 0
      %362 = vmatpush.bf16.msra.mxu0 0
      %363 = vmatpush.bf16.msra.mxu0 0
      %364 = vmatpush.bf16.msra.mxu0 %v306
      %365 = vmatpush.bf16.msra.mxu0 %v305
      %366 = vmatmul.bf16.gmra.mxu0 %v311
      %v367 = vpop.f32.mrf.mxu0
      %v368 = vadd.f32 0.0, %v367
      %v369 = vpop.f32.mrf.mxu0
      %v370 = vadd.f32 0.0, %v369
      %371 = vmatmul.bf16.gmra.mxu0 %v314
      %v372 = vpop.f32.mrf.mxu0
      %v373 = vadd.f32 0.0, %v372
      %v374 = vpop.f32.mrf.mxu0
      %v375 = vadd.f32 0.0, %v374
      %376 = vmatmul.bf16.gmra.mxu0 %v317
      %v377 = vpop.f32.mrf.mxu0
      %v378 = vadd.f32 0.0, %v377
      %v379 = vpop.f32.mrf.mxu0
      %v380 = vadd.f32 0.0, %v379
      %381 = vmatmul.bf16.gmra.mxu0 %v320
      %v382 = vpop.f32.mrf.mxu0
      %v383 = vadd.f32 0.0, %v382
      %v384 = vpop.f32.mrf.mxu0
      %v385 = vadd.f32 0.0, %v384
      %386 = vmatmul.bf16.gmra.mxu0 %v323
      %v387 = vpop.f32.mrf.mxu0
      %v388 = vadd.f32 0.0, %v387
      %v389 = vpop.f32.mrf.mxu0
      %v390 = vadd.f32 0.0, %v389
      %391 = vmatmul.bf16.gmra.mxu0 %v326
      %v392 = vpop.f32.mrf.mxu0
      %v393 = vadd.f32 0.0, %v392
      %v394 = vpop.f32.mrf.mxu0
      %v395 = vadd.f32 0.0, %v394
      %396 = vmatmul.bf16.gmra.mxu0 %v329
      %v397 = vpop.f32.mrf.mxu0
      %v398 = vadd.f32 0.0, %v397
      %v399 = vpop.f32.mrf.mxu0
      %v400 = vadd.f32 0.0, %v399
      %401 = vmatmul.bf16.gmra.mxu0 %v332
      %v402 = vpop.f32.mrf.mxu0
      %v403 = vadd.f32 0.0, %v402
      %v404 = vpop.f32.mrf.mxu0
      %v405 = vadd.f32 0.0, %v404
      %406 = vmatmul.bf16.gmra.mxu0 %v335
      %v407 = vpop.f32.mrf.mxu0
      %v408 = vadd.f32 0.0, %v407
      %v409 = vpop.f32.mrf.mxu0
      %v410 = vadd.f32 0.0, %v409
      %411 = vmatmul.bf16.gmra.mxu0 %v338
      %v412 = vpop.f32.mrf.mxu0
      %v413 = vadd.f32 0.0, %v412
      %v414 = vpop.f32.mrf.mxu0
      %v415 = vadd.f32 0.0, %v414
      %416 = vmatmul.bf16.gmra.mxu0 %v341
      %v417 = vpop.f32.mrf.mxu0
      %v418 = vadd.f32 0.0, %v417
      %v419 = vpop.f32.mrf.mxu0
      %v420 = vadd.f32 0.0, %v419
      %421 = vmatmul.bf16.gmra.mxu0 %v344
      %v422 = vpop.f32.mrf.mxu0
      %v423 = vadd.f32 0.0, %v422
      %v424 = vpop.f32.mrf.mxu0
      %v425 = vadd.f32 0.0, %v424
      %426 = vmatmul.bf16.gmra.mxu0 %v347
      %v427 = vpop.f32.mrf.mxu0
      %v428 = vadd.f32 0.0, %v427
      %v429 = vpop.f32.mrf.mxu0
      %v430 = vadd.f32 0.0, %v429
      %431 = vmatmul.bf16.gmra.mxu0 %v350
      %v432 = vpop.f32.mrf.mxu0
      %v433 = vadd.f32 0.0, %v432
      %v434 = vpop.f32.mrf.mxu0
      %v435 = vadd.f32 0.0, %v434
      %436 = vmatmul.bf16.gmra.mxu0 %v353
      %v437 = vpop.f32.mrf.mxu0
      %v438 = vadd.f32 0.0, %v437
      %v439 = vpop.f32.mrf.mxu0
      %v440 = vadd.f32 0.0, %v439
      %441 = vmatmul.bf16.gmra.mxu0 %v356
      %v442 = vpop.f32.mrf.mxu0
      %v443 = vadd.f32 0.0, %v442
      %v444 = vpop.f32.mrf.mxu0
      %v445 = vadd.f32 0.0, %v444
      %446 = vdwg.mxu0
      %v447 = vperm.slane %v216, 0
      %v448 = vadd.f32 %v368, %v447
      %v449 = vadd.f32 %v370, %v447
      %v450 = vadd.f32 %v373, %v447
      %v451 = vadd.f32 %v375, %v447
      %v452 = vadd.f32 %v378, %v447
      %v453 = vadd.f32 %v380, %v447
      %v454 = vadd.f32 %v383, %v447
      %v455 = vadd.f32 %v385, %v447
      %v456 = vadd.f32 %v388, %v447
      %v457 = vadd.f32 %v390, %v447
      %v458 = vadd.f32 %v393, %v447
      %v459 = vadd.f32 %v395, %v447
      %v460 = vadd.f32 %v398, %v447
      %v461 = vadd.f32 %v400, %v447
      %v462 = vadd.f32 %v403, %v447
      %v463 = vadd.f32 %v405, %v447
      %v464 = vadd.f32 %v408, %v447
      %v465 = vadd.f32 %v410, %v447
      %v466 = vadd.f32 %v413, %v447
      %v467 = vadd.f32 %v415, %v447
      %v468 = vadd.f32 %v418, %v447
      %v469 = vadd.f32 %v420, %v447
      %v470 = vadd.f32 %v423, %v447
      %v471 = vadd.f32 %v425, %v447
      %v472 = vadd.f32 %v428, %v447
      %v473 = vadd.f32 %v430, %v447
      %v474 = vadd.f32 %v433, %v447
      %v475 = vadd.f32 %v435, %v447
      %v476 = vadd.f32 %v438, %v447
      %v477 = vadd.f32 %v440, %v447
      %v478 = vadd.f32 %v443, %v447
      %v479 = vadd.f32 %v445, %v447
      %v480 = vtanh.pop %v448
      %v481 = vtanh.pop %v449
      %v482 = vtanh.pop %v450
      %v483 = vtanh.pop %v451
      %v484 = vtanh.pop %v452
      %v485 = vtanh.pop %v453
      %v486 = vtanh.pop %v454
      %v487 = vtanh.pop %v455
      %v488 = vtanh.pop %v456
      %v489 = vtanh.pop %v457
      %v490 = vtanh.pop %v458
      %v491 = vtanh.pop %v459
      %v492 = vtanh.pop %v460
      %v493 = vtanh.pop %v461
      %v494 = vtanh.pop %v462
      %v495 = vtanh.pop %v463
      %v496 = vtanh.pop %v464
      %v497 = vtanh.pop %v465
      %v498 = vtanh.pop %v466
      %v499 = vtanh.pop %v467
      %v500 = vtanh.pop %v468
      %v501 = vtanh.pop %v469
      %v502 = vtanh.pop %v470
      %v503 = vtanh.pop %v471
      %v504 = vtanh.pop %v472
      %v505 = vtanh.pop %v473
      %v506 = vtanh.pop %v474
      %v507 = vtanh.pop %v475
      %v508 = vtanh.pop %v476
      %v509 = vtanh.pop %v477
      %v510 = vtanh.pop %v478
      %v511 = vtanh.pop %v479
      %v512 = vpack.c.bf16 %v481, %v480
      %v513 = vpack.c.bf16 %v483, %v482
      %v514 = vpack.c.bf16 %v485, %v484
      %v515 = vpack.c.bf16 %v487, %v486
      %v516 = vpack.c.bf16 %v489, %v488
      %v517 = vpack.c.bf16 %v491, %v490
      %v518 = vpack.c.bf16 %v493, %v492
      %v519 = vpack.c.bf16 %v495, %v494
      %v520 = vpack.c.bf16 %v497, %v496
      %v521 = vpack.c.bf16 %v499, %v498
      %v522 = vpack.c.bf16 %v501, %v500
      %v523 = vpack.c.bf16 %v503, %v502
      %v524 = vpack.c.bf16 %v505, %v504
      %v525 = vpack.c.bf16 %v507, %v506
      %v526 = vpack.c.bf16 %v509, %v508
      %v527 = vpack.c.bf16 %v511, %v510
      %v532 = vunpack.c.l.b16 %v211
      %v533 = vunpack.c.l.b16 %v212
      %v534 = vunpack.c.l.b16 %v213
      %v535 = vunpack.c.l.b16 %v214
      %v536 = vpack.c.b16 %v533, %v532
      %v537 = vpack.c.b16 %v535, %v534
      %v541 = vsel %vm309, %v512, 0
      %v544 = vsel %vm309, %v513, 0
      %v547 = vsel %vm309, %v514, 0
      %v550 = vsel %vm309, %v515, 0
      %v553 = vsel %vm309, %v516, 0
      %v556 = vsel %vm309, %v517, 0
      %v559 = vsel %vm309, %v518, 0
      %v562 = vsel %vm309, %v519, 0
      %v565 = vsel %vm309, %v520, 0
      %v568 = vsel %vm309, %v521, 0
      %v571 = vsel %vm309, %v522, 0
      %v574 = vsel %vm309, %v523, 0
      %v577 = vsel %vm309, %v524, 0
      %v580 = vsel %vm309, %v525, 0
      %v583 = vsel %vm309, %v526, 0
      %v586 = vsel %vm309, %v527, 0
      %588 = vmatpush.bf16.msra.mxu0 0
      %589 = vmatpush.bf16.msra.mxu0 0
      %590 = vmatpush.bf16.msra.mxu0 0
      %591 = vmatpush.bf16.msra.mxu0 0
      %592 = vmatpush.bf16.msra.mxu0 0
      %593 = vmatpush.bf16.msra.mxu0 0
      %594 = vmatpush.bf16.msra.mxu0 %v537
      %595 = vmatpush.bf16.msra.mxu0 %v536
      %596 = vmatmul.bf16.gmra.mxu0 %v541
      %v597 = vpop.f32.mrf.mxu0
      %v598 = vadd.f32 0.0, %v597
      %v599 = vpop.f32.mrf.mxu0
      %v600 = vadd.f32 0.0, %v599
      %601 = vmatmul.bf16.gmra.mxu0 %v544
      %v602 = vpop.f32.mrf.mxu0
      %v603 = vadd.f32 0.0, %v602
      %v604 = vpop.f32.mrf.mxu0
      %v605 = vadd.f32 0.0, %v604
      %606 = vmatmul.bf16.gmra.mxu0 %v547
      %v607 = vpop.f32.mrf.mxu0
      %v608 = vadd.f32 0.0, %v607
      %v609 = vpop.f32.mrf.mxu0
      %v610 = vadd.f32 0.0, %v609
      %611 = vmatmul.bf16.gmra.mxu0 %v550
      %v612 = vpop.f32.mrf.mxu0
      %v613 = vadd.f32 0.0, %v612
      %v614 = vpop.f32.mrf.mxu0
      %v615 = vadd.f32 0.0, %v614
      %616 = vmatmul.bf16.gmra.mxu0 %v553
      %v617 = vpop.f32.mrf.mxu0
      %v618 = vadd.f32 0.0, %v617
      %v619 = vpop.f32.mrf.mxu0
      %v620 = vadd.f32 0.0, %v619
      %621 = vmatmul.bf16.gmra.mxu0 %v556
      %v622 = vpop.f32.mrf.mxu0
      %v623 = vadd.f32 0.0, %v622
      %v624 = vpop.f32.mrf.mxu0
      %v625 = vadd.f32 0.0, %v624
      %626 = vmatmul.bf16.gmra.mxu0 %v559
      %v627 = vpop.f32.mrf.mxu0
      %v628 = vadd.f32 0.0, %v627
      %v629 = vpop.f32.mrf.mxu0
      %v630 = vadd.f32 0.0, %v629
      %631 = vmatmul.bf16.gmra.mxu0 %v562
      %v632 = vpop.f32.mrf.mxu0
      %v633 = vadd.f32 0.0, %v632
      %v634 = vpop.f32.mrf.mxu0
      %v635 = vadd.f32 0.0, %v634
      %636 = vmatmul.bf16.gmra.mxu0 %v565
      %v637 = vpop.f32.mrf.mxu0
      %v638 = vadd.f32 0.0, %v637
      %v639 = vpop.f32.mrf.mxu0
      %v640 = vadd.f32 0.0, %v639
      %641 = vmatmul.bf16.gmra.mxu0 %v568
      %v642 = vpop.f32.mrf.mxu0
      %v643 = vadd.f32 0.0, %v642
      %v644 = vpop.f32.mrf.mxu0
      %v645 = vadd.f32 0.0, %v644
      %646 = vmatmul.bf16.gmra.mxu0 %v571
      %v647 = vpop.f32.mrf.mxu0
      %v648 = vadd.f32 0.0, %v647
      %v649 = vpop.f32.mrf.mxu0
      %v650 = vadd.f32 0.0, %v649
      %651 = vmatmul.bf16.gmra.mxu0 %v574
      %v652 = vpop.f32.mrf.mxu0
      %v653 = vadd.f32 0.0, %v652
      %v654 = vpop.f32.mrf.mxu0
      %v655 = vadd.f32 0.0, %v654
      %656 = vmatmul.bf16.gmra.mxu0 %v577
      %v657 = vpop.f32.mrf.mxu0
      %v658 = vadd.f32 0.0, %v657
      %v659 = vpop.f32.mrf.mxu0
      %v660 = vadd.f32 0.0, %v659
      %661 = vmatmul.bf16.gmra.mxu0 %v580
      %v662 = vpop.f32.mrf.mxu0
      %v663 = vadd.f32 0.0, %v662
      %v664 = vpop.f32.mrf.mxu0
      %v665 = vadd.f32 0.0, %v664
      %666 = vmatmul.bf16.gmra.mxu0 %v583
      %v667 = vpop.f32.mrf.mxu0
      %v668 = vadd.f32 0.0, %v667
      %v669 = vpop.f32.mrf.mxu0
      %v670 = vadd.f32 0.0, %v669
      %671 = vmatmul.bf16.gmra.mxu0 %v586
      %v672 = vpop.f32.mrf.mxu0
      %v673 = vadd.f32 0.0, %v672
      %v674 = vpop.f32.mrf.mxu0
      %v675 = vadd.f32 0.0, %v674
      %676 = vdwg.mxu0
      %709 = vrot.lane.b32.xlu0 %v598, 32
      %v710 = vpop.permute.xlu0 %709
      %711 = vrot.lane.b32.xlu0 %v600, 32
      %v712 = vpop.permute.xlu0 %711
      %713 = vrot.lane.b32.xlu0 %v603, 32
      %v714 = vpop.permute.xlu0 %713
      %715 = vrot.lane.b32.xlu0 %v605, 32
      %v716 = vpop.permute.xlu0 %715
      %717 = vrot.lane.b32.xlu0 %v608, 32
      %v718 = vpop.permute.xlu0 %717
      %719 = vrot.lane.b32.xlu0 %v610, 32
      %v720 = vpop.permute.xlu0 %719
      %721 = vrot.lane.b32.xlu0 %v613, 32
      %v722 = vpop.permute.xlu0 %721
      %723 = vrot.lane.b32.xlu0 %v615, 32
      %v724 = vpop.permute.xlu0 %723
      %725 = vrot.lane.b32.xlu0 %v618, 32
      %v726 = vpop.permute.xlu0 %725
      %727 = vrot.lane.b32.xlu0 %v620, 32
      %v728 = vpop.permute.xlu0 %727
      %729 = vrot.lane.b32.xlu0 %v623, 32
      %v730 = vpop.permute.xlu0 %729
      %731 = vrot.lane.b32.xlu0 %v625, 32
      %v732 = vpop.permute.xlu0 %731
      %733 = vrot.lane.b32.xlu0 %v628, 32
      %v734 = vpop.permute.xlu0 %733
      %735 = vrot.lane.b32.xlu0 %v630, 32
      %v736 = vpop.permute.xlu0 %735
      %737 = vrot.lane.b32.xlu0 %v633, 32
      %v738 = vpop.permute.xlu0 %737
      %739 = vrot.lane.b32.xlu0 %v635, 32
      %v740 = vpop.permute.xlu0 %739
      %741 = vrot.lane.b32.xlu0 %v638, 32
      %v742 = vpop.permute.xlu0 %741
      %743 = vrot.lane.b32.xlu0 %v640, 32
      %v744 = vpop.permute.xlu0 %743
      %745 = vrot.lane.b32.xlu0 %v643, 32
      %v746 = vpop.permute.xlu0 %745
      %747 = vrot.lane.b32.xlu0 %v645, 32
      %v748 = vpop.permute.xlu0 %747
      %749 = vrot.lane.b32.xlu0 %v648, 32
      %v750 = vpop.permute.xlu0 %749
      %751 = vrot.lane.b32.xlu0 %v650, 32
      %v752 = vpop.permute.xlu0 %751
      %753 = vrot.lane.b32.xlu0 %v653, 32
      %v754 = vpop.permute.xlu0 %753
      %755 = vrot.lane.b32.xlu0 %v655, 32
      %v756 = vpop.permute.xlu0 %755
      %757 = vrot.lane.b32.xlu0 %v658, 32
      %v758 = vpop.permute.xlu0 %757
      %759 = vrot.lane.b32.xlu0 %v660, 32
      %v760 = vpop.permute.xlu0 %759
      %761 = vrot.lane.b32.xlu0 %v663, 32
      %v762 = vpop.permute.xlu0 %761
      %763 = vrot.lane.b32.xlu0 %v665, 32
      %v764 = vpop.permute.xlu0 %763
      %765 = vrot.lane.b32.xlu0 %v668, 32
      %v766 = vpop.permute.xlu0 %765
      %767 = vrot.lane.b32.xlu0 %v670, 32
      %v768 = vpop.permute.xlu0 %767
      %769 = vrot.lane.b32.xlu0 %v673, 32
      %v770 = vpop.permute.xlu0 %769
      %771 = vrot.lane.b32.xlu0 %v675, 32
      %v772 = vpop.permute.xlu0 %771
      %v805 = vadd.f32 %v448, %v710
      %v806 = vadd.f32 %v449, %v712
      %v807 = vadd.f32 %v450, %v714
      %v808 = vadd.f32 %v451, %v716
      %v809 = vadd.f32 %v452, %v718
      %v810 = vadd.f32 %v453, %v720
      %v811 = vadd.f32 %v454, %v722
      %v812 = vadd.f32 %v455, %v724
      %v813 = vadd.f32 %v456, %v726
      %v814 = vadd.f32 %v457, %v728
      %v815 = vadd.f32 %v458, %v730
      %v816 = vadd.f32 %v459, %v732
      %v817 = vadd.f32 %v460, %v734
      %v818 = vadd.f32 %v461, %v736
      %v819 = vadd.f32 %v462, %v738
      %v820 = vadd.f32 %v463, %v740
      %v821 = vadd.f32 %v464, %v742
      %v822 = vadd.f32 %v465, %v744
      %v823 = vadd.f32 %v466, %v746
      %v824 = vadd.f32 %v467, %v748
      %v825 = vadd.f32 %v468, %v750
      %v826 = vadd.f32 %v469, %v752
      %v827 = vadd.f32 %v470, %v754
      %v828 = vadd.f32 %v471, %v756
      %v829 = vadd.f32 %v472, %v758
      %v830 = vadd.f32 %v473, %v760
      %v831 = vadd.f32 %v474, %v762
      %v832 = vadd.f32 %v475, %v764
      %v833 = vadd.f32 %v476, %v766
      %v834 = vadd.f32 %v477, %v768
      %v835 = vadd.f32 %v478, %v770
      %v836 = vadd.f32 %v479, %v772
      %v837 = vtanh.pop %v805
      %v838 = vtanh.pop %v806
      %v839 = vtanh.pop %v807
      %v840 = vtanh.pop %v808
      %v841 = vtanh.pop %v809
      %v842 = vtanh.pop %v810
      %v843 = vtanh.pop %v811
      %v844 = vtanh.pop %v812
      %v845 = vtanh.pop %v813
      %v846 = vtanh.pop %v814
      %v847 = vtanh.pop %v815
      %v848 = vtanh.pop %v816
      %v849 = vtanh.pop %v817
      %v850 = vtanh.pop %v818
      %v851 = vtanh.pop %v819
      %v852 = vtanh.pop %v820
      %v853 = vtanh.pop %v821
      %v854 = vtanh.pop %v822
      %v855 = vtanh.pop %v823
      %v856 = vtanh.pop %v824
      %v857 = vtanh.pop %v825
      %v858 = vtanh.pop %v826
      %v859 = vtanh.pop %v827
      %v860 = vtanh.pop %v828
      %v861 = vtanh.pop %v829
      %v862 = vtanh.pop %v830
      %v863 = vtanh.pop %v831
      %v864 = vtanh.pop %v832
      %v865 = vtanh.pop %v833
      %v866 = vtanh.pop %v834
      %v867 = vtanh.pop %v835
      %v868 = vtanh.pop %v836
      %v869 = vpack.c.bf16 %v838, %v837
      %v870 = vpack.c.bf16 %v840, %v839
      %v871 = vpack.c.bf16 %v842, %v841
      %v872 = vpack.c.bf16 %v844, %v843
      %v873 = vpack.c.bf16 %v846, %v845
      %v874 = vpack.c.bf16 %v848, %v847
      %v875 = vpack.c.bf16 %v850, %v849
      %v876 = vpack.c.bf16 %v852, %v851
      %v877 = vpack.c.bf16 %v854, %v853
      %v878 = vpack.c.bf16 %v856, %v855
      %v879 = vpack.c.bf16 %v858, %v857
      %v880 = vpack.c.bf16 %v860, %v859
      %v881 = vpack.c.bf16 %v862, %v861
      %v882 = vpack.c.bf16 %v864, %v863
      %v883 = vpack.c.bf16 %v866, %v865
      %v884 = vpack.c.bf16 %v868, %v867
      %901 = vrot.lane.b32.xlu0 %v869, 96
      %v902 = vpop.permute.xlu0 %901
      %903 = vrot.lane.b32.xlu0 %v870, 96
      %v904 = vpop.permute.xlu0 %903
      %905 = vrot.lane.b32.xlu0 %v871, 96
      %v906 = vpop.permute.xlu0 %905
      %907 = vrot.lane.b32.xlu0 %v872, 96
      %v908 = vpop.permute.xlu0 %907
      %909 = vrot.lane.b32.xlu0 %v873, 96
      %v910 = vpop.permute.xlu0 %909
      %911 = vrot.lane.b32.xlu0 %v874, 96
      %v912 = vpop.permute.xlu0 %911
      %913 = vrot.lane.b32.xlu0 %v875, 96
      %v914 = vpop.permute.xlu0 %913
      %915 = vrot.lane.b32.xlu0 %v876, 96
      %v916 = vpop.permute.xlu0 %915
      %917 = vrot.lane.b32.xlu0 %v877, 96
      %v918 = vpop.permute.xlu0 %917
      %919 = vrot.lane.b32.xlu0 %v878, 96
      %v920 = vpop.permute.xlu0 %919
      %921 = vrot.lane.b32.xlu0 %v879, 96
      %v922 = vpop.permute.xlu0 %921
      %923 = vrot.lane.b32.xlu0 %v880, 96
      %v924 = vpop.permute.xlu0 %923
      %925 = vrot.lane.b32.xlu0 %v881, 96
      %v926 = vpop.permute.xlu0 %925
      %927 = vrot.lane.b32.xlu0 %v882, 96
      %v928 = vpop.permute.xlu0 %927
      %929 = vrot.lane.b32.xlu0 %v883, 96
      %v930 = vpop.permute.xlu0 %929
      %931 = vrot.lane.b32.xlu0 %v884, 96
      %v932 = vpop.permute.xlu0 %931
      %933 = vrot.lane.b32.xlu0 %v536, 96
      %v934 = vpop.permute.xlu0 %933
      %935 = vrot.lane.b32.xlu0 %v537, 96
      %v936 = vpop.permute.xlu0 %935
      %v940 = vsel %vm309, %v902, 0
      %v943 = vsel %vm309, %v904, 0
      %v946 = vsel %vm309, %v906, 0
      %v949 = vsel %vm309, %v908, 0
      %v952 = vsel %vm309, %v910, 0
      %v955 = vsel %vm309, %v912, 0
      %v958 = vsel %vm309, %v914, 0
      %v961 = vsel %vm309, %v916, 0
      %v964 = vsel %vm309, %v918, 0
      %v967 = vsel %vm309, %v920, 0
      %v970 = vsel %vm309, %v922, 0
      %v973 = vsel %vm309, %v924, 0
      %v976 = vsel %vm309, %v926, 0
      %v979 = vsel %vm309, %v928, 0
      %v982 = vsel %vm309, %v930, 0
      %v985 = vsel %vm309, %v932, 0
      %987 = vmatpush.bf16.msra.mxu0 0
      %988 = vmatpush.bf16.msra.mxu0 0
      %989 = vmatpush.bf16.msra.mxu0 0
      %990 = vmatpush.bf16.msra.mxu0 0
      %991 = vmatpush.bf16.msra.mxu0 0
      %992 = vmatpush.bf16.msra.mxu0 0
      %993 = vmatpush.bf16.msra.mxu0 %v936
      %994 = vmatpush.bf16.msra.mxu0 %v934
      %995 = vmatmul.bf16.gmra.mxu0 %v940
      %v996 = vpop.f32.mrf.mxu0
      %v997 = vadd.f32 0.0, %v996
      %v998 = vpop.f32.mrf.mxu0
      %v999 = vadd.f32 0.0, %v998
      %1000 = vmatmul.bf16.gmra.mxu0 %v943
      %v1001 = vpop.f32.mrf.mxu0
      %v1002 = vadd.f32 0.0, %v1001
      %v1003 = vpop.f32.mrf.mxu0
      %v1004 = vadd.f32 0.0, %v1003
      %1005 = vmatmul.bf16.gmra.mxu0 %v946
      %v1006 = vpop.f32.mrf.mxu0
      %v1007 = vadd.f32 0.0, %v1006
      %v1008 = vpop.f32.mrf.mxu0
      %v1009 = vadd.f32 0.0, %v1008
      %1010 = vmatmul.bf16.gmra.mxu0 %v949
      %v1011 = vpop.f32.mrf.mxu0
      %v1012 = vadd.f32 0.0, %v1011
      %v1013 = vpop.f32.mrf.mxu0
      %v1014 = vadd.f32 0.0, %v1013
      %1015 = vmatmul.bf16.gmra.mxu0 %v952
      %v1016 = vpop.f32.mrf.mxu0
      %v1017 = vadd.f32 0.0, %v1016
      %v1018 = vpop.f32.mrf.mxu0
      %v1019 = vadd.f32 0.0, %v1018
      %1020 = vmatmul.bf16.gmra.mxu0 %v955
      %v1021 = vpop.f32.mrf.mxu0
      %v1022 = vadd.f32 0.0, %v1021
      %v1023 = vpop.f32.mrf.mxu0
      %v1024 = vadd.f32 0.0, %v1023
      %1025 = vmatmul.bf16.gmra.mxu0 %v958
      %v1026 = vpop.f32.mrf.mxu0
      %v1027 = vadd.f32 0.0, %v1026
      %v1028 = vpop.f32.mrf.mxu0
      %v1029 = vadd.f32 0.0, %v1028
      %1030 = vmatmul.bf16.gmra.mxu0 %v961
      %v1031 = vpop.f32.mrf.mxu0
      %v1032 = vadd.f32 0.0, %v1031
      %v1033 = vpop.f32.mrf.mxu0
      %v1034 = vadd.f32 0.0, %v1033
      %1035 = vmatmul.bf16.gmra.mxu0 %v964
      %v1036 = vpop.f32.mrf.mxu0
      %v1037 = vadd.f32 0.0, %v1036
      %v1038 = vpop.f32.mrf.mxu0
      %v1039 = vadd.f32 0.0, %v1038
      %1040 = vmatmul.bf16.gmra.mxu0 %v967
      %v1041 = vpop.f32.mrf.mxu0
      %v1042 = vadd.f32 0.0, %v1041
      %v1043 = vpop.f32.mrf.mxu0
      %v1044 = vadd.f32 0.0, %v1043
      %1045 = vmatmul.bf16.gmra.mxu0 %v970
      %v1046 = vpop.f32.mrf.mxu0
      %v1047 = vadd.f32 0.0, %v1046
      %v1048 = vpop.f32.mrf.mxu0
      %v1049 = vadd.f32 0.0, %v1048
      %1050 = vmatmul.bf16.gmra.mxu0 %v973
      %v1051 = vpop.f32.mrf.mxu0
      %v1052 = vadd.f32 0.0, %v1051
      %v1053 = vpop.f32.mrf.mxu0
      %v1054 = vadd.f32 0.0, %v1053
      %1055 = vmatmul.bf16.gmra.mxu0 %v976
      %v1056 = vpop.f32.mrf.mxu0
      %v1057 = vadd.f32 0.0, %v1056
      %v1058 = vpop.f32.mrf.mxu0
      %v1059 = vadd.f32 0.0, %v1058
      %1060 = vmatmul.bf16.gmra.mxu0 %v979
      %v1061 = vpop.f32.mrf.mxu0
      %v1062 = vadd.f32 0.0, %v1061
      %v1063 = vpop.f32.mrf.mxu0
      %v1064 = vadd.f32 0.0, %v1063
      %1065 = vmatmul.bf16.gmra.mxu0 %v982
      %v1066 = vpop.f32.mrf.mxu0
      %v1067 = vadd.f32 0.0, %v1066
      %v1068 = vpop.f32.mrf.mxu0
      %v1069 = vadd.f32 0.0, %v1068
      %1070 = vmatmul.bf16.gmra.mxu0 %v985
      %v1071 = vpop.f32.mrf.mxu0
      %v1072 = vadd.f32 0.0, %v1071
      %v1073 = vpop.f32.mrf.mxu0
      %v1074 = vadd.f32 0.0, %v1073
      %1075 = vdwg.mxu0
      %1108 = vrot.lane.b32.xlu0 %v997, 64
      %v1109 = vpop.permute.xlu0 %1108
      %1110 = vrot.lane.b32.xlu0 %v999, 64
      %v1111 = vpop.permute.xlu0 %1110
      %1112 = vrot.lane.b32.xlu0 %v1002, 64
      %v1113 = vpop.permute.xlu0 %1112
      %1114 = vrot.lane.b32.xlu0 %v1004, 64
      %v1115 = vpop.permute.xlu0 %1114
      %1116 = vrot.lane.b32.xlu0 %v1007, 64
      %v1117 = vpop.permute.xlu0 %1116
      %1118 = vrot.lane.b32.xlu0 %v1009, 64
      %v1119 = vpop.permute.xlu0 %1118
      %1120 = vrot.lane.b32.xlu0 %v1012, 64
      %v1121 = vpop.permute.xlu0 %1120
      %1122 = vrot.lane.b32.xlu0 %v1014, 64
      %v1123 = vpop.permute.xlu0 %1122
      %1124 = vrot.lane.b32.xlu0 %v1017, 64
      %v1125 = vpop.permute.xlu0 %1124
      %1126 = vrot.lane.b32.xlu0 %v1019, 64
      %v1127 = vpop.permute.xlu0 %1126
      %1128 = vrot.lane.b32.xlu0 %v1022, 64
      %v1129 = vpop.permute.xlu0 %1128
      %1130 = vrot.lane.b32.xlu0 %v1024, 64
      %v1131 = vpop.permute.xlu0 %1130
      %1132 = vrot.lane.b32.xlu0 %v1027, 64
      %v1133 = vpop.permute.xlu0 %1132
      %1134 = vrot.lane.b32.xlu0 %v1029, 64
      %v1135 = vpop.permute.xlu0 %1134
      %1136 = vrot.lane.b32.xlu0 %v1032, 64
      %v1137 = vpop.permute.xlu0 %1136
      %1138 = vrot.lane.b32.xlu0 %v1034, 64
      %v1139 = vpop.permute.xlu0 %1138
      %1140 = vrot.lane.b32.xlu0 %v1037, 64
      %v1141 = vpop.permute.xlu0 %1140
      %1142 = vrot.lane.b32.xlu0 %v1039, 64
      %v1143 = vpop.permute.xlu0 %1142
      %1144 = vrot.lane.b32.xlu0 %v1042, 64
      %v1145 = vpop.permute.xlu0 %1144
      %1146 = vrot.lane.b32.xlu0 %v1044, 64
      %v1147 = vpop.permute.xlu0 %1146
      %1148 = vrot.lane.b32.xlu0 %v1047, 64
      %v1149 = vpop.permute.xlu0 %1148
      %1150 = vrot.lane.b32.xlu0 %v1049, 64
      %v1151 = vpop.permute.xlu0 %1150
      %1152 = vrot.lane.b32.xlu0 %v1052, 64
      %v1153 = vpop.permute.xlu0 %1152
      %1154 = vrot.lane.b32.xlu0 %v1054, 64
      %v1155 = vpop.permute.xlu0 %1154
      %1156 = vrot.lane.b32.xlu0 %v1057, 64
      %v1157 = vpop.permute.xlu0 %1156
      %1158 = vrot.lane.b32.xlu0 %v1059, 64
      %v1159 = vpop.permute.xlu0 %1158
      %1160 = vrot.lane.b32.xlu0 %v1062, 64
      %v1161 = vpop.permute.xlu0 %1160
      %1162 = vrot.lane.b32.xlu0 %v1064, 64
      %v1163 = vpop.permute.xlu0 %1162
      %1164 = vrot.lane.b32.xlu0 %v1067, 64
      %v1165 = vpop.permute.xlu0 %1164
      %1166 = vrot.lane.b32.xlu0 %v1069, 64
      %v1167 = vpop.permute.xlu0 %1166
      %1168 = vrot.lane.b32.xlu0 %v1072, 64
      %v1169 = vpop.permute.xlu0 %1168
      %1170 = vrot.lane.b32.xlu0 %v1074, 64
      %v1171 = vpop.permute.xlu0 %1170
      %v1204 = vadd.f32 %v448, %v1109
      %v1205 = vadd.f32 %v449, %v1111
      %v1206 = vadd.f32 %v450, %v1113
      %v1207 = vadd.f32 %v451, %v1115
      %v1208 = vadd.f32 %v452, %v1117
      %v1209 = vadd.f32 %v453, %v1119
      %v1210 = vadd.f32 %v454, %v1121
      %v1211 = vadd.f32 %v455, %v1123
      %v1212 = vadd.f32 %v456, %v1125
      %v1213 = vadd.f32 %v457, %v1127
      %v1214 = vadd.f32 %v458, %v1129
      %v1215 = vadd.f32 %v459, %v1131
      %v1216 = vadd.f32 %v460, %v1133
      %v1217 = vadd.f32 %v461, %v1135
      %v1218 = vadd.f32 %v462, %v1137
      %v1219 = vadd.f32 %v463, %v1139
      %v1220 = vadd.f32 %v464, %v1141
      %v1221 = vadd.f32 %v465, %v1143
      %v1222 = vadd.f32 %v466, %v1145
      %v1223 = vadd.f32 %v467, %v1147
      %v1224 = vadd.f32 %v468, %v1149
      %v1225 = vadd.f32 %v469, %v1151
      %v1226 = vadd.f32 %v470, %v1153
      %v1227 = vadd.f32 %v471, %v1155
      %v1228 = vadd.f32 %v472, %v1157
      %v1229 = vadd.f32 %v473, %v1159
      %v1230 = vadd.f32 %v474, %v1161
      %v1231 = vadd.f32 %v475, %v1163
      %v1232 = vadd.f32 %v476, %v1165
      %v1233 = vadd.f32 %v477, %v1167
      %v1234 = vadd.f32 %v478, %v1169
      %v1235 = vadd.f32 %v479, %v1171
      %v1236 = vtanh.pop %v1204
      %v1237 = vtanh.pop %v1205
      %v1238 = vtanh.pop %v1206
      %v1239 = vtanh.pop %v1207
      %v1240 = vtanh.pop %v1208
      %v1241 = vtanh.pop %v1209
      %v1242 = vtanh.pop %v1210
      %v1243 = vtanh.pop %v1211
      %v1244 = vtanh.pop %v1212
      %v1245 = vtanh.pop %v1213
      %v1246 = vtanh.pop %v1214
      %v1247 = vtanh.pop %v1215
      %v1248 = vtanh.pop %v1216
      %v1249 = vtanh.pop %v1217
      %v1250 = vtanh.pop %v1218
      %v1251 = vtanh.pop %v1219
      %v1252 = vtanh.pop %v1220
      %v1253 = vtanh.pop %v1221
      %v1254 = vtanh.pop %v1222
      %v1255 = vtanh.pop %v1223
      %v1256 = vtanh.pop %v1224
      %v1257 = vtanh.pop %v1225
      %v1258 = vtanh.pop %v1226
      %v1259 = vtanh.pop %v1227
      %v1260 = vtanh.pop %v1228
      %v1261 = vtanh.pop %v1229
      %v1262 = vtanh.pop %v1230
      %v1263 = vtanh.pop %v1231
      %v1264 = vtanh.pop %v1232
      %v1265 = vtanh.pop %v1233
      %v1266 = vtanh.pop %v1234
      %v1267 = vtanh.pop %v1235
      %v1268 = vlaneseq
      %v1269 = vand.u32 %v1268, 127
      %vm1270 = vcmp.lt.s32.totalorder %v1269, 8
      %1303 = vrot.lane.b32.xlu0 %v368, 32
      %v1304 = vpop.permute.xlu0 %1303
      %1305 = vrot.lane.b32.xlu0 %v370, 32
      %v1306 = vpop.permute.xlu0 %1305
      %1307 = vrot.lane.b32.xlu0 %v373, 32
      %v1308 = vpop.permute.xlu0 %1307
      %1309 = vrot.lane.b32.xlu0 %v375, 32
      %v1310 = vpop.permute.xlu0 %1309
      %1311 = vrot.lane.b32.xlu0 %v378, 32
      %v1312 = vpop.permute.xlu0 %1311
      %1313 = vrot.lane.b32.xlu0 %v380, 32
      %v1314 = vpop.permute.xlu0 %1313
      %1315 = vrot.lane.b32.xlu0 %v383, 32
      %v1316 = vpop.permute.xlu0 %1315
      %1317 = vrot.lane.b32.xlu0 %v385, 32
      %v1318 = vpop.permute.xlu0 %1317
      %1319 = vrot.lane.b32.xlu0 %v388, 32
      %v1320 = vpop.permute.xlu0 %1319
      %1321 = vrot.lane.b32.xlu0 %v390, 32
      %v1322 = vpop.permute.xlu0 %1321
      %1323 = vrot.lane.b32.xlu0 %v393, 32
      %v1324 = vpop.permute.xlu0 %1323
      %1325 = vrot.lane.b32.xlu0 %v395, 32
      %v1326 = vpop.permute.xlu0 %1325
      %1327 = vrot.lane.b32.xlu0 %v398, 32
      %v1328 = vpop.permute.xlu0 %1327
      %1329 = vrot.lane.b32.xlu0 %v400, 32
      %v1330 = vpop.permute.xlu0 %1329
      %1331 = vrot.lane.b32.xlu0 %v403, 32
      %v1332 = vpop.permute.xlu0 %1331
      %1333 = vrot.lane.b32.xlu0 %v405, 32
      %v1334 = vpop.permute.xlu0 %1333
      %1335 = vrot.lane.b32.xlu0 %v408, 32
      %v1336 = vpop.permute.xlu0 %1335
      %1337 = vrot.lane.b32.xlu0 %v410, 32
      %v1338 = vpop.permute.xlu0 %1337
      %1339 = vrot.lane.b32.xlu0 %v413, 32
      %v1340 = vpop.permute.xlu0 %1339
      %1341 = vrot.lane.b32.xlu0 %v415, 32
      %v1342 = vpop.permute.xlu0 %1341
      %1343 = vrot.lane.b32.xlu0 %v418, 32
      %v1344 = vpop.permute.xlu0 %1343
      %1345 = vrot.lane.b32.xlu0 %v420, 32
      %v1346 = vpop.permute.xlu0 %1345
      %1347 = vrot.lane.b32.xlu0 %v423, 32
      %v1348 = vpop.permute.xlu0 %1347
      %1349 = vrot.lane.b32.xlu0 %v425, 32
      %v1350 = vpop.permute.xlu0 %1349
      %1351 = vrot.lane.b32.xlu0 %v428, 32
      %v1352 = vpop.permute.xlu0 %1351
      %1353 = vrot.lane.b32.xlu0 %v430, 32
      %v1354 = vpop.permute.xlu0 %1353
      %1355 = vrot.lane.b32.xlu0 %v433, 32
      %v1356 = vpop.permute.xlu0 %1355
      %1357 = vrot.lane.b32.xlu0 %v435, 32
      %v1358 = vpop.permute.xlu0 %1357
      %1359 = vrot.lane.b32.xlu0 %v438, 32
      %v1360 = vpop.permute.xlu0 %1359
      %1361 = vrot.lane.b32.xlu0 %v440, 32
      %v1362 = vpop.permute.xlu0 %1361
      %1363 = vrot.lane.b32.xlu0 %v443, 32
      %v1364 = vpop.permute.xlu0 %1363
      %1365 = vrot.lane.b32.xlu0 %v445, 32
      %v1366 = vpop.permute.xlu0 %1365
      %v1399 = vsel %vm1270, %v1304, -1e+30
      %v1400 = vsel %vm1270, %v1306, -1e+30
      %v1401 = vsel %vm1270, %v1308, -1e+30
      %v1402 = vsel %vm1270, %v1310, -1e+30
      %v1403 = vsel %vm1270, %v1312, -1e+30
      %v1404 = vsel %vm1270, %v1314, -1e+30
      %v1405 = vsel %vm1270, %v1316, -1e+30
      %v1406 = vsel %vm1270, %v1318, -1e+30
      %v1407 = vsel %vm1270, %v1320, -1e+30
      %v1408 = vsel %vm1270, %v1322, -1e+30
      %v1409 = vsel %vm1270, %v1324, -1e+30
      %v1410 = vsel %vm1270, %v1326, -1e+30
      %v1411 = vsel %vm1270, %v1328, -1e+30
      %v1412 = vsel %vm1270, %v1330, -1e+30
      %v1413 = vsel %vm1270, %v1332, -1e+30
      %v1414 = vsel %vm1270, %v1334, -1e+30
      %v1415 = vsel %vm1270, %v1336, -1e+30
      %v1416 = vsel %vm1270, %v1338, -1e+30
      %v1417 = vsel %vm1270, %v1340, -1e+30
      %v1418 = vsel %vm1270, %v1342, -1e+30
      %v1419 = vsel %vm1270, %v1344, -1e+30
      %v1420 = vsel %vm1270, %v1346, -1e+30
      %v1421 = vsel %vm1270, %v1348, -1e+30
      %v1422 = vsel %vm1270, %v1350, -1e+30
      %v1423 = vsel %vm1270, %v1352, -1e+30
      %v1424 = vsel %vm1270, %v1354, -1e+30
      %v1425 = vsel %vm1270, %v1356, -1e+30
      %v1426 = vsel %vm1270, %v1358, -1e+30
      %v1427 = vsel %vm1270, %v1360, -1e+30
      %v1428 = vsel %vm1270, %v1362, -1e+30
      %v1429 = vsel %vm1270, %v1364, -1e+30
      %v1430 = vsel %vm1270, %v1366, -1e+30
      %v1431 = vsel %vm309, %v1399, -inf
      %1432 = vmax.xlane.f32.xlu0 %v1431
      %v1433 = vpop.xlane.xlu0 %1432
      %v1434 = vsel %vm309, %v1400, -inf
      %1435 = vmax.xlane.f32.xlu0 %v1434
      %v1436 = vpop.xlane.xlu0 %1435
      %v1437 = vsel %vm309, %v1401, -inf
      %1438 = vmax.xlane.f32.xlu0 %v1437
      %v1439 = vpop.xlane.xlu0 %1438
      %v1440 = vsel %vm309, %v1402, -inf
      %1441 = vmax.xlane.f32.xlu0 %v1440
      %v1442 = vpop.xlane.xlu0 %1441
      %v1443 = vsel %vm309, %v1403, -inf
      %1444 = vmax.xlane.f32.xlu0 %v1443
      %v1445 = vpop.xlane.xlu0 %1444
      %v1446 = vsel %vm309, %v1404, -inf
      %1447 = vmax.xlane.f32.xlu0 %v1446
      %v1448 = vpop.xlane.xlu0 %1447
      %v1449 = vsel %vm309, %v1405, -inf
      %1450 = vmax.xlane.f32.xlu0 %v1449
      %v1451 = vpop.xlane.xlu0 %1450
      %v1452 = vsel %vm309, %v1406, -inf
      %1453 = vmax.xlane.f32.xlu0 %v1452
      %v1454 = vpop.xlane.xlu0 %1453
      %v1455 = vsel %vm309, %v1407, -inf
      %1456 = vmax.xlane.f32.xlu0 %v1455
      %v1457 = vpop.xlane.xlu0 %1456
      %v1458 = vsel %vm309, %v1408, -inf
      %1459 = vmax.xlane.f32.xlu0 %v1458
      %v1460 = vpop.xlane.xlu0 %1459
      %v1461 = vsel %vm309, %v1409, -inf
      %1462 = vmax.xlane.f32.xlu0 %v1461
      %v1463 = vpop.xlane.xlu0 %1462
      %v1464 = vsel %vm309, %v1410, -inf
      %1465 = vmax.xlane.f32.xlu0 %v1464
      %v1466 = vpop.xlane.xlu0 %1465
      %v1467 = vsel %vm309, %v1411, -inf
      %1468 = vmax.xlane.f32.xlu0 %v1467
      %v1469 = vpop.xlane.xlu0 %1468
      %v1470 = vsel %vm309, %v1412, -inf
      %1471 = vmax.xlane.f32.xlu0 %v1470
      %v1472 = vpop.xlane.xlu0 %1471
      %v1473 = vsel %vm309, %v1413, -inf
      %1474 = vmax.xlane.f32.xlu0 %v1473
      %v1475 = vpop.xlane.xlu0 %1474
      %v1476 = vsel %vm309, %v1414, -inf
      %1477 = vmax.xlane.f32.xlu0 %v1476
      %v1478 = vpop.xlane.xlu0 %1477
      %v1479 = vsel %vm309, %v1415, -inf
      %1480 = vmax.xlane.f32.xlu0 %v1479
      %v1481 = vpop.xlane.xlu0 %1480
      %v1482 = vsel %vm309, %v1416, -inf
      %1483 = vmax.xlane.f32.xlu0 %v1482
      %v1484 = vpop.xlane.xlu0 %1483
      %v1485 = vsel %vm309, %v1417, -inf
      %1486 = vmax.xlane.f32.xlu0 %v1485
      %v1487 = vpop.xlane.xlu0 %1486
      %v1488 = vsel %vm309, %v1418, -inf
      %1489 = vmax.xlane.f32.xlu0 %v1488
      %v1490 = vpop.xlane.xlu0 %1489
      %v1491 = vsel %vm309, %v1419, -inf
      %1492 = vmax.xlane.f32.xlu0 %v1491
      %v1493 = vpop.xlane.xlu0 %1492
      %v1494 = vsel %vm309, %v1420, -inf
      %1495 = vmax.xlane.f32.xlu0 %v1494
      %v1496 = vpop.xlane.xlu0 %1495
      %v1497 = vsel %vm309, %v1421, -inf
      %1498 = vmax.xlane.f32.xlu0 %v1497
      %v1499 = vpop.xlane.xlu0 %1498
      %v1500 = vsel %vm309, %v1422, -inf
      %1501 = vmax.xlane.f32.xlu0 %v1500
      %v1502 = vpop.xlane.xlu0 %1501
      %v1503 = vsel %vm309, %v1423, -inf
      %1504 = vmax.xlane.f32.xlu0 %v1503
      %v1505 = vpop.xlane.xlu0 %1504
      %v1506 = vsel %vm309, %v1424, -inf
      %1507 = vmax.xlane.f32.xlu0 %v1506
      %v1508 = vpop.xlane.xlu0 %1507
      %v1509 = vsel %vm309, %v1425, -inf
      %1510 = vmax.xlane.f32.xlu0 %v1509
      %v1511 = vpop.xlane.xlu0 %1510
      %v1512 = vsel %vm309, %v1426, -inf
      %1513 = vmax.xlane.f32.xlu0 %v1512
      %v1514 = vpop.xlane.xlu0 %1513
      %v1515 = vsel %vm309, %v1427, -inf
      %1516 = vmax.xlane.f32.xlu0 %v1515
      %v1517 = vpop.xlane.xlu0 %1516
      %v1518 = vsel %vm309, %v1428, -inf
      %1519 = vmax.xlane.f32.xlu0 %v1518
      %v1520 = vpop.xlane.xlu0 %1519
      %v1521 = vsel %vm309, %v1429, -inf
      %1522 = vmax.xlane.f32.xlu0 %v1521
      %v1523 = vpop.xlane.xlu0 %1522
      %v1524 = vsel %vm309, %v1430, -inf
      %1525 = vmax.xlane.f32.xlu0 %v1524
      %v1526 = vpop.xlane.xlu0 %1525
      %v1527 = vsub.f32 %v1399, %v1433
      %v1528 = vsub.f32 %v1400, %v1436
      %v1529 = vsub.f32 %v1401, %v1439
      %v1530 = vsub.f32 %v1402, %v1442
      %v1531 = vsub.f32 %v1403, %v1445
      %v1532 = vsub.f32 %v1404, %v1448
      %v1533 = vsub.f32 %v1405, %v1451
      %v1534 = vsub.f32 %v1406, %v1454
      %v1535 = vsub.f32 %v1407, %v1457
      %v1536 = vsub.f32 %v1408, %v1460
      %v1537 = vsub.f32 %v1409, %v1463
      %v1538 = vsub.f32 %v1410, %v1466
      %v1539 = vsub.f32 %v1411, %v1469
      %v1540 = vsub.f32 %v1412, %v1472
      %v1541 = vsub.f32 %v1413, %v1475
      %v1542 = vsub.f32 %v1414, %v1478
      %v1543 = vsub.f32 %v1415, %v1481
      %v1544 = vsub.f32 %v1416, %v1484
      %v1545 = vsub.f32 %v1417, %v1487
      %v1546 = vsub.f32 %v1418, %v1490
      %v1547 = vsub.f32 %v1419, %v1493
      %v1548 = vsub.f32 %v1420, %v1496
      %v1549 = vsub.f32 %v1421, %v1499
      %v1550 = vsub.f32 %v1422, %v1502
      %v1551 = vsub.f32 %v1423, %v1505
      %v1552 = vsub.f32 %v1424, %v1508
      %v1553 = vsub.f32 %v1425, %v1511
      %v1554 = vsub.f32 %v1426, %v1514
      %v1555 = vsub.f32 %v1427, %v1517
      %v1556 = vsub.f32 %v1428, %v1520
      %v1557 = vsub.f32 %v1429, %v1523
      %v1558 = vsub.f32 %v1430, %v1526
      %v1559 = vmul.f32 %v1527, 1.442695
      %v1560 = vpow.pop %v1559
      %v1561 = vmul.f32 %v1528, 1.442695
      %v1562 = vpow.pop %v1561
      %v1563 = vmul.f32 %v1529, 1.442695
      %v1564 = vpow.pop %v1563
      %v1565 = vmul.f32 %v1530, 1.442695
      %v1566 = vpow.pop %v1565
      %v1567 = vmul.f32 %v1531, 1.442695
      %v1568 = vpow.pop %v1567
      %v1569 = vmul.f32 %v1532, 1.442695
      %v1570 = vpow.pop %v1569
      %v1571 = vmul.f32 %v1533, 1.442695
      %v1572 = vpow.pop %v1571
      %v1573 = vmul.f32 %v1534, 1.442695
      %v1574 = vpow.pop %v1573
      %v1575 = vmul.f32 %v1535, 1.442695
      %v1576 = vpow.pop %v1575
      %v1577 = vmul.f32 %v1536, 1.442695
      %v1578 = vpow.pop %v1577
      %v1579 = vmul.f32 %v1537, 1.442695
      %v1580 = vpow.pop %v1579
      %v1581 = vmul.f32 %v1538, 1.442695
      %v1582 = vpow.pop %v1581
      %v1583 = vmul.f32 %v1539, 1.442695
      %v1584 = vpow.pop %v1583
      %v1585 = vmul.f32 %v1540, 1.442695
      %v1586 = vpow.pop %v1585
      %v1587 = vmul.f32 %v1541, 1.442695
      %v1588 = vpow.pop %v1587
      %v1589 = vmul.f32 %v1542, 1.442695
      %v1590 = vpow.pop %v1589
      %v1591 = vmul.f32 %v1543, 1.442695
      %v1592 = vpow.pop %v1591
      %v1593 = vmul.f32 %v1544, 1.442695
      %v1594 = vpow.pop %v1593
      %v1595 = vmul.f32 %v1545, 1.442695
      %v1596 = vpow.pop %v1595
      %v1597 = vmul.f32 %v1546, 1.442695
      %v1598 = vpow.pop %v1597
      %v1599 = vmul.f32 %v1547, 1.442695
      %v1600 = vpow.pop %v1599
      %v1601 = vmul.f32 %v1548, 1.442695
      %v1602 = vpow.pop %v1601
      %v1603 = vmul.f32 %v1549, 1.442695
      %v1604 = vpow.pop %v1603
      %v1605 = vmul.f32 %v1550, 1.442695
      %v1606 = vpow.pop %v1605
      %v1607 = vmul.f32 %v1551, 1.442695
      %v1608 = vpow.pop %v1607
      %v1609 = vmul.f32 %v1552, 1.442695
      %v1610 = vpow.pop %v1609
      %v1611 = vmul.f32 %v1553, 1.442695
      %v1612 = vpow.pop %v1611
      %v1613 = vmul.f32 %v1554, 1.442695
      %v1614 = vpow.pop %v1613
      %v1615 = vmul.f32 %v1555, 1.442695
      %v1616 = vpow.pop %v1615
      %v1617 = vmul.f32 %v1556, 1.442695
      %v1618 = vpow.pop %v1617
      %v1619 = vmul.f32 %v1557, 1.442695
      %v1620 = vpow.pop %v1619
      %v1621 = vmul.f32 %v1558, 1.442695
      %v1622 = vpow.pop %v1621
      %v1623 = vsel %vm309, %v1560, 0.0
      %1624 = vadd.xlane.f32.xlu0 %v1623
      %v1625 = vpop.xlane.xlu0 %1624
      %v1626 = vsel %vm309, %v1562, 0.0
      %1627 = vadd.xlane.f32.xlu0 %v1626
      %v1628 = vpop.xlane.xlu0 %1627
      %v1629 = vsel %vm309, %v1564, 0.0
      %1630 = vadd.xlane.f32.xlu0 %v1629
      %v1631 = vpop.xlane.xlu0 %1630
      %v1632 = vsel %vm309, %v1566, 0.0
      %1633 = vadd.xlane.f32.xlu0 %v1632
      %v1634 = vpop.xlane.xlu0 %1633
      %v1635 = vsel %vm309, %v1568, 0.0
      %1636 = vadd.xlane.f32.xlu0 %v1635
      %v1637 = vpop.xlane.xlu0 %1636
      %v1638 = vsel %vm309, %v1570, 0.0
      %1639 = vadd.xlane.f32.xlu0 %v1638
      %v1640 = vpop.xlane.xlu0 %1639
      %v1641 = vsel %vm309, %v1572, 0.0
      %1642 = vadd.xlane.f32.xlu0 %v1641
      %v1643 = vpop.xlane.xlu0 %1642
      %v1644 = vsel %vm309, %v1574, 0.0
      %1645 = vadd.xlane.f32.xlu0 %v1644
      %v1646 = vpop.xlane.xlu0 %1645
      %v1647 = vsel %vm309, %v1576, 0.0
      %1648 = vadd.xlane.f32.xlu0 %v1647
      %v1649 = vpop.xlane.xlu0 %1648
      %v1650 = vsel %vm309, %v1578, 0.0
      %1651 = vadd.xlane.f32.xlu0 %v1650
      %v1652 = vpop.xlane.xlu0 %1651
      %v1653 = vsel %vm309, %v1580, 0.0
      %1654 = vadd.xlane.f32.xlu0 %v1653
      %v1655 = vpop.xlane.xlu0 %1654
      %v1656 = vsel %vm309, %v1582, 0.0
      %1657 = vadd.xlane.f32.xlu0 %v1656
      %v1658 = vpop.xlane.xlu0 %1657
      %v1659 = vsel %vm309, %v1584, 0.0
      %1660 = vadd.xlane.f32.xlu0 %v1659
      %v1661 = vpop.xlane.xlu0 %1660
      %v1662 = vsel %vm309, %v1586, 0.0
      %1663 = vadd.xlane.f32.xlu0 %v1662
      %v1664 = vpop.xlane.xlu0 %1663
      %v1665 = vsel %vm309, %v1588, 0.0
      %1666 = vadd.xlane.f32.xlu0 %v1665
      %v1667 = vpop.xlane.xlu0 %1666
      %v1668 = vsel %vm309, %v1590, 0.0
      %1669 = vadd.xlane.f32.xlu0 %v1668
      %v1670 = vpop.xlane.xlu0 %1669
      %v1671 = vsel %vm309, %v1592, 0.0
      %1672 = vadd.xlane.f32.xlu0 %v1671
      %v1673 = vpop.xlane.xlu0 %1672
      %v1674 = vsel %vm309, %v1594, 0.0
      %1675 = vadd.xlane.f32.xlu0 %v1674
      %v1676 = vpop.xlane.xlu0 %1675
      %v1677 = vsel %vm309, %v1596, 0.0
      %1678 = vadd.xlane.f32.xlu0 %v1677
      %v1679 = vpop.xlane.xlu0 %1678
      %v1680 = vsel %vm309, %v1598, 0.0
      %1681 = vadd.xlane.f32.xlu0 %v1680
      %v1682 = vpop.xlane.xlu0 %1681
      %v1683 = vsel %vm309, %v1600, 0.0
      %1684 = vadd.xlane.f32.xlu0 %v1683
      %v1685 = vpop.xlane.xlu0 %1684
      %v1686 = vsel %vm309, %v1602, 0.0
      %1687 = vadd.xlane.f32.xlu0 %v1686
      %v1688 = vpop.xlane.xlu0 %1687
      %v1689 = vsel %vm309, %v1604, 0.0
      %1690 = vadd.xlane.f32.xlu0 %v1689
      %v1691 = vpop.xlane.xlu0 %1690
      %v1692 = vsel %vm309, %v1606, 0.0
      %1693 = vadd.xlane.f32.xlu0 %v1692
      %v1694 = vpop.xlane.xlu0 %1693
      %v1695 = vsel %vm309, %v1608, 0.0
      %1696 = vadd.xlane.f32.xlu0 %v1695
      %v1697 = vpop.xlane.xlu0 %1696
      %v1698 = vsel %vm309, %v1610, 0.0
      %1699 = vadd.xlane.f32.xlu0 %v1698
      %v1700 = vpop.xlane.xlu0 %1699
      %v1701 = vsel %vm309, %v1612, 0.0
      %1702 = vadd.xlane.f32.xlu0 %v1701
      %v1703 = vpop.xlane.xlu0 %1702
      %v1704 = vsel %vm309, %v1614, 0.0
      %1705 = vadd.xlane.f32.xlu0 %v1704
      %v1706 = vpop.xlane.xlu0 %1705
      %v1707 = vsel %vm309, %v1616, 0.0
      %1708 = vadd.xlane.f32.xlu0 %v1707
      %v1709 = vpop.xlane.xlu0 %1708
      %v1710 = vsel %vm309, %v1618, 0.0
      %1711 = vadd.xlane.f32.xlu0 %v1710
      %v1712 = vpop.xlane.xlu0 %1711
      %v1713 = vsel %vm309, %v1620, 0.0
      %1714 = vadd.xlane.f32.xlu0 %v1713
      %v1715 = vpop.xlane.xlu0 %1714
      %v1716 = vsel %vm309, %v1622, 0.0
      %1717 = vadd.xlane.f32.xlu0 %v1716
      %v1718 = vpop.xlane.xlu0 %1717
      %v1719 = vrcp.pop %v1625
      %v1720 = vrcp.pop %v1628
      %v1721 = vrcp.pop %v1631
      %v1722 = vrcp.pop %v1634
      %v1723 = vrcp.pop %v1637
      %v1724 = vrcp.pop %v1640
      %v1725 = vrcp.pop %v1643
      %v1726 = vrcp.pop %v1646
      %v1727 = vrcp.pop %v1649
      %v1728 = vrcp.pop %v1652
      %v1729 = vrcp.pop %v1655
      %v1730 = vrcp.pop %v1658
      %v1731 = vrcp.pop %v1661
      %v1732 = vrcp.pop %v1664
      %v1733 = vrcp.pop %v1667
      %v1734 = vrcp.pop %v1670
      %v1735 = vrcp.pop %v1673
      %v1736 = vrcp.pop %v1676
      %v1737 = vrcp.pop %v1679
      %v1738 = vrcp.pop %v1682
      %v1739 = vrcp.pop %v1685
      %v1740 = vrcp.pop %v1688
      %v1741 = vrcp.pop %v1691
      %v1742 = vrcp.pop %v1694
      %v1743 = vrcp.pop %v1697
      %v1744 = vrcp.pop %v1700
      %v1745 = vrcp.pop %v1703
      %v1746 = vrcp.pop %v1706
      %v1747 = vrcp.pop %v1709
      %v1748 = vrcp.pop %v1712
      %v1749 = vrcp.pop %v1715
      %v1750 = vrcp.pop %v1718
      %v1751 = vmul.f32 %v1560, %v1719
      %v1752 = vmul.f32 %v1562, %v1720
      %v1753 = vmul.f32 %v1564, %v1721
      %v1754 = vmul.f32 %v1566, %v1722
      %v1755 = vmul.f32 %v1568, %v1723
      %v1756 = vmul.f32 %v1570, %v1724
      %v1757 = vmul.f32 %v1572, %v1725
      %v1758 = vmul.f32 %v1574, %v1726
      %v1759 = vmul.f32 %v1576, %v1727
      %v1760 = vmul.f32 %v1578, %v1728
      %v1761 = vmul.f32 %v1580, %v1729
      %v1762 = vmul.f32 %v1582, %v1730
      %v1763 = vmul.f32 %v1584, %v1731
      %v1764 = vmul.f32 %v1586, %v1732
      %v1765 = vmul.f32 %v1588, %v1733
      %v1766 = vmul.f32 %v1590, %v1734
      %v1767 = vmul.f32 %v1592, %v1735
      %v1768 = vmul.f32 %v1594, %v1736
      %v1769 = vmul.f32 %v1596, %v1737
      %v1770 = vmul.f32 %v1598, %v1738
      %v1771 = vmul.f32 %v1600, %v1739
      %v1772 = vmul.f32 %v1602, %v1740
      %v1773 = vmul.f32 %v1604, %v1741
      %v1774 = vmul.f32 %v1606, %v1742
      %v1775 = vmul.f32 %v1608, %v1743
      %v1776 = vmul.f32 %v1610, %v1744
      %v1777 = vmul.f32 %v1612, %v1745
      %v1778 = vmul.f32 %v1614, %v1746
      %v1779 = vmul.f32 %v1616, %v1747
      %v1780 = vmul.f32 %v1618, %v1748
      %v1781 = vmul.f32 %v1620, %v1749
      %v1782 = vmul.f32 %v1622, %v1750
      %v1783 = vunpack.c.l.bf16 %v175
      %v1784 = vunpack.c.l.bf16 %v176
      %v1785 = vunpack.c.l.bf16 %v177
      %v1786 = vunpack.c.l.bf16 %v178
      %v1787 = vunpack.c.l.bf16 %v179
      %v1788 = vunpack.c.l.bf16 %v180
      %v1789 = vunpack.c.l.bf16 %v181
      %v1790 = vunpack.c.l.bf16 %v182
      %v1791 = vunpack.c.l.bf16 %v183
      %v1792 = vunpack.c.l.bf16 %v184
      %v1793 = vunpack.c.l.bf16 %v185
      %v1794 = vunpack.c.l.bf16 %v186
      %v1795 = vunpack.c.l.bf16 %v187
      %v1796 = vunpack.c.l.bf16 %v188
      %v1797 = vunpack.c.l.bf16 %v189
      %v1798 = vunpack.c.l.bf16 %v190
      %v1799 = vunpack.c.l.bf16 %v191
      %v1800 = vunpack.c.l.bf16 %v192
      %v1801 = vunpack.c.l.bf16 %v193
      %v1802 = vunpack.c.l.bf16 %v194
      %v1803 = vunpack.c.l.bf16 %v195
      %v1804 = vunpack.c.l.bf16 %v196
      %v1805 = vunpack.c.l.bf16 %v197
      %v1806 = vunpack.c.l.bf16 %v198
      %v1807 = vunpack.c.l.bf16 %v199
      %v1808 = vunpack.c.l.bf16 %v200
      %v1809 = vunpack.c.l.bf16 %v201
      %v1810 = vunpack.c.l.bf16 %v202
      %v1811 = vunpack.c.l.bf16 %v203
      %v1812 = vunpack.c.l.bf16 %v204
      %v1813 = vunpack.c.l.bf16 %v205
      %v1814 = vunpack.c.l.bf16 %v206
      %v1815 = vmul.f32 %v1751, %v1783
      %v1816 = vmul.f32 %v1752, %v1784
      %v1817 = vmul.f32 %v1753, %v1785
      %v1818 = vmul.f32 %v1754, %v1786
      %v1819 = vmul.f32 %v1755, %v1787
      %v1820 = vmul.f32 %v1756, %v1788
      %v1821 = vmul.f32 %v1757, %v1789
      %v1822 = vmul.f32 %v1758, %v1790
      %v1823 = vmul.f32 %v1759, %v1791
      %v1824 = vmul.f32 %v1760, %v1792
      %v1825 = vmul.f32 %v1761, %v1793
      %v1826 = vmul.f32 %v1762, %v1794
      %v1827 = vmul.f32 %v1763, %v1795
      %v1828 = vmul.f32 %v1764, %v1796
      %v1829 = vmul.f32 %v1765, %v1797
      %v1830 = vmul.f32 %v1766, %v1798
      %v1831 = vmul.f32 %v1767, %v1799
      %v1832 = vmul.f32 %v1768, %v1800
      %v1833 = vmul.f32 %v1769, %v1801
      %v1834 = vmul.f32 %v1770, %v1802
      %v1835 = vmul.f32 %v1771, %v1803
      %v1836 = vmul.f32 %v1772, %v1804
      %v1837 = vmul.f32 %v1773, %v1805
      %v1838 = vmul.f32 %v1774, %v1806
      %v1839 = vmul.f32 %v1775, %v1807
      %v1840 = vmul.f32 %v1776, %v1808
      %v1841 = vmul.f32 %v1777, %v1809
      %v1842 = vmul.f32 %v1778, %v1810
      %v1843 = vmul.f32 %v1779, %v1811
      %v1844 = vmul.f32 %v1780, %v1812
      %v1845 = vmul.f32 %v1781, %v1813
      %v1846 = vmul.f32 %v1782, %v1814
      %1879 = vrot.lane.b32.xlu0 %v1815, 96
      %v1880 = vpop.permute.xlu0 %1879
      %1881 = vrot.lane.b32.xlu0 %v1816, 96
      %v1882 = vpop.permute.xlu0 %1881
      %1883 = vrot.lane.b32.xlu0 %v1817, 96
      %v1884 = vpop.permute.xlu0 %1883
      %1885 = vrot.lane.b32.xlu0 %v1818, 96
      %v1886 = vpop.permute.xlu0 %1885
      %1887 = vrot.lane.b32.xlu0 %v1819, 96
      %v1888 = vpop.permute.xlu0 %1887
      %1889 = vrot.lane.b32.xlu0 %v1820, 96
      %v1890 = vpop.permute.xlu0 %1889
      %1891 = vrot.lane.b32.xlu0 %v1821, 96
      %v1892 = vpop.permute.xlu0 %1891
      %1893 = vrot.lane.b32.xlu0 %v1822, 96
      %v1894 = vpop.permute.xlu0 %1893
      %1895 = vrot.lane.b32.xlu0 %v1823, 96
      %v1896 = vpop.permute.xlu0 %1895
      %1897 = vrot.lane.b32.xlu0 %v1824, 96
      %v1898 = vpop.permute.xlu0 %1897
      %1899 = vrot.lane.b32.xlu0 %v1825, 96
      %v1900 = vpop.permute.xlu0 %1899
      %1901 = vrot.lane.b32.xlu0 %v1826, 96
      %v1902 = vpop.permute.xlu0 %1901
      %1903 = vrot.lane.b32.xlu0 %v1827, 96
      %v1904 = vpop.permute.xlu0 %1903
      %1905 = vrot.lane.b32.xlu0 %v1828, 96
      %v1906 = vpop.permute.xlu0 %1905
      %1907 = vrot.lane.b32.xlu0 %v1829, 96
      %v1908 = vpop.permute.xlu0 %1907
      %1909 = vrot.lane.b32.xlu0 %v1830, 96
      %v1910 = vpop.permute.xlu0 %1909
      %1911 = vrot.lane.b32.xlu0 %v1831, 96
      %v1912 = vpop.permute.xlu0 %1911
      %1913 = vrot.lane.b32.xlu0 %v1832, 96
      %v1914 = vpop.permute.xlu0 %1913
      %1915 = vrot.lane.b32.xlu0 %v1833, 96
      %v1916 = vpop.permute.xlu0 %1915
      %1917 = vrot.lane.b32.xlu0 %v1834, 96
      %v1918 = vpop.permute.xlu0 %1917
      %1919 = vrot.lane.b32.xlu0 %v1835, 96
      %v1920 = vpop.permute.xlu0 %1919
      %1921 = vrot.lane.b32.xlu0 %v1836, 96
      %v1922 = vpop.permute.xlu0 %1921
      %1923 = vrot.lane.b32.xlu0 %v1837, 96
      %v1924 = vpop.permute.xlu0 %1923
      %1925 = vrot.lane.b32.xlu0 %v1838, 96
      %v1926 = vpop.permute.xlu0 %1925
      %1927 = vrot.lane.b32.xlu0 %v1839, 96
      %v1928 = vpop.permute.xlu0 %1927
      %1929 = vrot.lane.b32.xlu0 %v1840, 96
      %v1930 = vpop.permute.xlu0 %1929
      %1931 = vrot.lane.b32.xlu0 %v1841, 96
      %v1932 = vpop.permute.xlu0 %1931
      %1933 = vrot.lane.b32.xlu0 %v1842, 96
      %v1934 = vpop.permute.xlu0 %1933
      %1935 = vrot.lane.b32.xlu0 %v1843, 96
      %v1936 = vpop.permute.xlu0 %1935
      %1937 = vrot.lane.b32.xlu0 %v1844, 96
      %v1938 = vpop.permute.xlu0 %1937
      %1939 = vrot.lane.b32.xlu0 %v1845, 96
      %v1940 = vpop.permute.xlu0 %1939
      %1941 = vrot.lane.b32.xlu0 %v1846, 96
      %v1942 = vpop.permute.xlu0 %1941
      %v1975 = vsel %vm309, %v480, %v837
      %v1976 = vsel %vm309, %v481, %v838
      %v1977 = vsel %vm309, %v482, %v839
      %v1978 = vsel %vm309, %v483, %v840
      %v1979 = vsel %vm309, %v484, %v841
      %v1980 = vsel %vm309, %v485, %v842
      %v1981 = vsel %vm309, %v486, %v843
      %v1982 = vsel %vm309, %v487, %v844
      %v1983 = vsel %vm309, %v488, %v845
      %v1984 = vsel %vm309, %v489, %v846
      %v1985 = vsel %vm309, %v490, %v847
      %v1986 = vsel %vm309, %v491, %v848
      %v1987 = vsel %vm309, %v492, %v849
      %v1988 = vsel %vm309, %v493, %v850
      %v1989 = vsel %vm309, %v494, %v851
      %v1990 = vsel %vm309, %v495, %v852
      %v1991 = vsel %vm309, %v496, %v853
      %v1992 = vsel %vm309, %v497, %v854
      %v1993 = vsel %vm309, %v498, %v855
      %v1994 = vsel %vm309, %v499, %v856
      %v1995 = vsel %vm309, %v500, %v857
      %v1996 = vsel %vm309, %v501, %v858
      %v1997 = vsel %vm309, %v502, %v859
      %v1998 = vsel %vm309, %v503, %v860
      %v1999 = vsel %vm309, %v504, %v861
      %v2000 = vsel %vm309, %v505, %v862
      %v2001 = vsel %vm309, %v506, %v863
      %v2002 = vsel %vm309, %v507, %v864
      %v2003 = vsel %vm309, %v508, %v865
      %v2004 = vsel %vm309, %v509, %v866
      %v2005 = vsel %vm309, %v510, %v867
      %v2006 = vsel %vm309, %v511, %v868
      %vm2007 = vcmask 523264
      %v2008 = vsel %vm2007, %v1975, %v1236
      %v2009 = vsel %vm2007, %v1976, %v1237
      %v2010 = vsel %vm2007, %v1977, %v1238
      %v2011 = vsel %vm2007, %v1978, %v1239
      %v2012 = vsel %vm2007, %v1979, %v1240
      %v2013 = vsel %vm2007, %v1980, %v1241
      %v2014 = vsel %vm2007, %v1981, %v1242
      %v2015 = vsel %vm2007, %v1982, %v1243
      %v2016 = vsel %vm2007, %v1983, %v1244
      %v2017 = vsel %vm2007, %v1984, %v1245
      %v2018 = vsel %vm2007, %v1985, %v1246
      %v2019 = vsel %vm2007, %v1986, %v1247
      %v2020 = vsel %vm2007, %v1987, %v1248
      %v2021 = vsel %vm2007, %v1988, %v1249
      %v2022 = vsel %vm2007, %v1989, %v1250
      %v2023 = vsel %vm2007, %v1990, %v1251
      %v2024 = vsel %vm2007, %v1991, %v1252
      %v2025 = vsel %vm2007, %v1992, %v1253
      %v2026 = vsel %vm2007, %v1993, %v1254
      %v2027 = vsel %vm2007, %v1994, %v1255
      %v2028 = vsel %vm2007, %v1995, %v1256
      %v2029 = vsel %vm2007, %v1996, %v1257
      %v2030 = vsel %vm2007, %v1997, %v1258
      %v2031 = vsel %vm2007, %v1998, %v1259
      %v2032 = vsel %vm2007, %v1999, %v1260
      %v2033 = vsel %vm2007, %v2000, %v1261
      %v2034 = vsel %vm2007, %v2001, %v1262
      %v2035 = vsel %vm2007, %v2002, %v1263
      %v2036 = vsel %vm2007, %v2003, %v1264
      %v2037 = vsel %vm2007, %v2004, %v1265
      %v2038 = vsel %vm2007, %v2005, %v1266
      %v2039 = vsel %vm2007, %v2006, %v1267
      %vm2040 = vcmask 785408
      %v2041 = vsel %vm2040, %v2008, %v1880
      %v2042 = vsel %vm2040, %v2009, %v1882
      %v2043 = vsel %vm2040, %v2010, %v1884
      %v2044 = vsel %vm2040, %v2011, %v1886
      %v2045 = vsel %vm2040, %v2012, %v1888
      %v2046 = vsel %vm2040, %v2013, %v1890
      %v2047 = vsel %vm2040, %v2014, %v1892
      %v2048 = vsel %vm2040, %v2015, %v1894
      %v2049 = vsel %vm2040, %v2016, %v1896
      %v2050 = vsel %vm2040, %v2017, %v1898
      %v2051 = vsel %vm2040, %v2018, %v1900
      %v2052 = vsel %vm2040, %v2019, %v1902
      %v2053 = vsel %vm2040, %v2020, %v1904
      %v2054 = vsel %vm2040, %v2021, %v1906
      %v2055 = vsel %vm2040, %v2022, %v1908
      %v2056 = vsel %vm2040, %v2023, %v1910
      %v2057 = vsel %vm2040, %v2024, %v1912
      %v2058 = vsel %vm2040, %v2025, %v1914
      %v2059 = vsel %vm2040, %v2026, %v1916
      %v2060 = vsel %vm2040, %v2027, %v1918
      %v2061 = vsel %vm2040, %v2028, %v1920
      %v2062 = vsel %vm2040, %v2029, %v1922
      %v2063 = vsel %vm2040, %v2030, %v1924
      %v2064 = vsel %vm2040, %v2031, %v1926
      %v2065 = vsel %vm2040, %v2032, %v1928
      %v2066 = vsel %vm2040, %v2033, %v1930
      %v2067 = vsel %vm2040, %v2034, %v1932
      %v2068 = vsel %vm2040, %v2035, %v1934
      %v2069 = vsel %vm2040, %v2036, %v1936
      %v2070 = vsel %vm2040, %v2037, %v1938
      %v2071 = vsel %vm2040, %v2038, %v1940
      %v2072 = vsel %vm2040, %v2039, %v1942
      %v2073 = vpack.c.bf16 %v2042, %v2041
      %v2074 = vpack.c.bf16 %v2044, %v2043
      %v2075 = vpack.c.bf16 %v2046, %v2045
      %v2076 = vpack.c.bf16 %v2048, %v2047
      %v2077 = vpack.c.bf16 %v2050, %v2049
      %v2078 = vpack.c.bf16 %v2052, %v2051
      %v2079 = vpack.c.bf16 %v2054, %v2053
      %v2080 = vpack.c.bf16 %v2056, %v2055
      %v2081 = vpack.c.bf16 %v2058, %v2057
      %v2082 = vpack.c.bf16 %v2060, %v2059
      %v2083 = vpack.c.bf16 %v2062, %v2061
      %v2084 = vpack.c.bf16 %v2064, %v2063
      %v2085 = vpack.c.bf16 %v2066, %v2065
      %v2086 = vpack.c.bf16 %v2068, %v2067
      %v2087 = vpack.c.bf16 %v2070, %v2069
      %v2088 = vpack.c.bf16 %v2072, %v2071
      %v2089 = vld [vmem:[%s2] sm:$0xf]
      %v2090 = vld [vmem:[%s2 + $0x4] sm:$0xf]
      %v2091 = vld [vmem:[%s2 + $0x8] sm:$0xf]
      %v2092 = vld [vmem:[%s2 + $0xc] sm:$0xf]
      %v2093 = vld [vmem:[%s2 + $0x10] sm:$0xf]
      %v2094 = vld [vmem:[%s2 + $0x14] sm:$0xf]
      %v2095 = vld [vmem:[%s2 + $0x18] sm:$0xf]
      %v2096 = vld [vmem:[%s2 + $0x1c] sm:$0xf]
      %v2097 = vld [vmem:[%s2 + $0x20] sm:$0xf]
      %v2098 = vld [vmem:[%s2 + $0x24] sm:$0xf]
      %v2099 = vld [vmem:[%s2 + $0x28] sm:$0xf]
      %v2100 = vld [vmem:[%s2 + $0x2c] sm:$0xf]
      %v2101 = vld [vmem:[%s2 + $0x30] sm:$0xf]
      %v2102 = vld [vmem:[%s2 + $0x34] sm:$0xf]
      %v2103 = vld [vmem:[%s2 + $0x38] sm:$0xf]
      %v2104 = vld [vmem:[%s2 + $0x3c] sm:$0xf]
      %v2105 = vperm.slane %v216, 1
      %v2122 = vunpack.c.l.b16 %v2089
      %v2123 = vunpack.c.l.b16 %v2090
      %v2124 = vunpack.c.l.b16 %v2091
      %v2125 = vunpack.c.l.b16 %v2092
      %v2126 = vunpack.c.l.b16 %v2093
      %v2127 = vunpack.c.l.b16 %v2094
      %v2128 = vunpack.c.l.b16 %v2095
      %v2129 = vunpack.c.l.b16 %v2096
      %v2130 = vunpack.c.l.b16 %v2097
      %v2131 = vunpack.c.l.b16 %v2098
      %v2132 = vunpack.c.l.b16 %v2099
      %v2133 = vunpack.c.l.b16 %v2100
      %v2134 = vunpack.c.l.b16 %v2101
      %v2135 = vunpack.c.l.b16 %v2102
      %v2136 = vunpack.c.l.b16 %v2103
      %v2137 = vunpack.c.l.b16 %v2104
      %v2138 = vpack.c.b16 %v2123, %v2122
      %v2139 = vpack.c.b16 %v2125, %v2124
      %v2140 = vpack.c.b16 %v2127, %v2126
      %v2141 = vpack.c.b16 %v2129, %v2128
      %v2142 = vpack.c.b16 %v2131, %v2130
      %v2143 = vpack.c.b16 %v2133, %v2132
      %v2144 = vpack.c.b16 %v2135, %v2134
      %v2145 = vpack.c.b16 %v2137, %v2136
      %2154 = vmatpush.bf16.msra.mxu0 %v2145
      %2155 = vmatpush.bf16.msra.mxu0 %v2144
      %2156 = vmatpush.bf16.msra.mxu0 %v2143
      %2157 = vmatpush.bf16.msra.mxu0 %v2142
      %2158 = vmatpush.bf16.msra.mxu0 %v2141
      %2159 = vmatpush.bf16.msra.mxu0 %v2140
      %2160 = vmatpush.bf16.msra.mxu0 %v2139
      %2161 = vmatpush.bf16.msra.mxu0 %v2138
      %2162 = vmatmul.bf16.gmra.mxu0 %v2073
      %v2163 = vpop.f32.mrf.mxu0
      %v2164 = vadd.f32 %v2105, %v2163
      %v2165 = vpop.f32.mrf.mxu0
      %v2166 = vadd.f32 %v2105, %v2165
      %2167 = vmatmul.bf16.gmra.mxu0 %v2074
      %v2168 = vpop.f32.mrf.mxu0
      %v2169 = vadd.f32 %v2105, %v2168
      %v2170 = vpop.f32.mrf.mxu0
      %v2171 = vadd.f32 %v2105, %v2170
      %2172 = vmatmul.bf16.gmra.mxu0 %v2075
      %v2173 = vpop.f32.mrf.mxu0
      %v2174 = vadd.f32 %v2105, %v2173
      %v2175 = vpop.f32.mrf.mxu0
      %v2176 = vadd.f32 %v2105, %v2175
      %2177 = vmatmul.bf16.gmra.mxu0 %v2076
      %v2178 = vpop.f32.mrf.mxu0
      %v2179 = vadd.f32 %v2105, %v2178
      %v2180 = vpop.f32.mrf.mxu0
      %v2181 = vadd.f32 %v2105, %v2180
      %2182 = vmatmul.bf16.gmra.mxu0 %v2077
      %v2183 = vpop.f32.mrf.mxu0
      %v2184 = vadd.f32 %v2105, %v2183
      %v2185 = vpop.f32.mrf.mxu0
      %v2186 = vadd.f32 %v2105, %v2185
      %2187 = vmatmul.bf16.gmra.mxu0 %v2078
      %v2188 = vpop.f32.mrf.mxu0
      %v2189 = vadd.f32 %v2105, %v2188
      %v2190 = vpop.f32.mrf.mxu0
      %v2191 = vadd.f32 %v2105, %v2190
      %2192 = vmatmul.bf16.gmra.mxu0 %v2079
      %v2193 = vpop.f32.mrf.mxu0
      %v2194 = vadd.f32 %v2105, %v2193
      %v2195 = vpop.f32.mrf.mxu0
      %v2196 = vadd.f32 %v2105, %v2195
      %2197 = vmatmul.bf16.gmra.mxu0 %v2080
      %v2198 = vpop.f32.mrf.mxu0
      %v2199 = vadd.f32 %v2105, %v2198
      %v2200 = vpop.f32.mrf.mxu0
      %v2201 = vadd.f32 %v2105, %v2200
      %2202 = vmatmul.bf16.gmra.mxu0 %v2081
      %v2203 = vpop.f32.mrf.mxu0
      %v2204 = vadd.f32 %v2105, %v2203
      %v2205 = vpop.f32.mrf.mxu0
      %v2206 = vadd.f32 %v2105, %v2205
      %2207 = vmatmul.bf16.gmra.mxu0 %v2082
      %v2208 = vpop.f32.mrf.mxu0
      %v2209 = vadd.f32 %v2105, %v2208
      %v2210 = vpop.f32.mrf.mxu0
      %v2211 = vadd.f32 %v2105, %v2210
      %2212 = vmatmul.bf16.gmra.mxu0 %v2083
      %v2213 = vpop.f32.mrf.mxu0
      %v2214 = vadd.f32 %v2105, %v2213
      %v2215 = vpop.f32.mrf.mxu0
      %v2216 = vadd.f32 %v2105, %v2215
      %2217 = vmatmul.bf16.gmra.mxu0 %v2084
      %v2218 = vpop.f32.mrf.mxu0
      %v2219 = vadd.f32 %v2105, %v2218
      %v2220 = vpop.f32.mrf.mxu0
      %v2221 = vadd.f32 %v2105, %v2220
      %2222 = vmatmul.bf16.gmra.mxu0 %v2085
      %v2223 = vpop.f32.mrf.mxu0
      %v2224 = vadd.f32 %v2105, %v2223
      %v2225 = vpop.f32.mrf.mxu0
      %v2226 = vadd.f32 %v2105, %v2225
      %2227 = vmatmul.bf16.gmra.mxu0 %v2086
      %v2228 = vpop.f32.mrf.mxu0
      %v2229 = vadd.f32 %v2105, %v2228
      %v2230 = vpop.f32.mrf.mxu0
      %v2231 = vadd.f32 %v2105, %v2230
      %2232 = vmatmul.bf16.gmra.mxu0 %v2087
      %v2233 = vpop.f32.mrf.mxu0
      %v2234 = vadd.f32 %v2105, %v2233
      %v2235 = vpop.f32.mrf.mxu0
      %v2236 = vadd.f32 %v2105, %v2235
      %2237 = vmatmul.bf16.gmra.mxu0 %v2088
      %v2238 = vpop.f32.mrf.mxu0
      %v2239 = vadd.f32 %v2105, %v2238
      %v2240 = vpop.f32.mrf.mxu0
      %v2241 = vadd.f32 %v2105, %v2240
      %2242 = vdwg.mxu0
      %2243 = vst [vmem:[%s172] sm:$0xff] %v2164
      %2244 = vst [vmem:[%s172 + $0x8] sm:$0xff] %v2166
      %2245 = vst [vmem:[%s172 + $0x10] sm:$0xff] %v2169
      %2246 = vst [vmem:[%s172 + $0x18] sm:$0xff] %v2171
      %2247 = vst [vmem:[%s172 + $0x20] sm:$0xff] %v2174
      %2248 = vst [vmem:[%s172 + $0x28] sm:$0xff] %v2176
      %2249 = vst [vmem:[%s172 + $0x30] sm:$0xff] %v2179
      %2250 = vst [vmem:[%s172 + $0x38] sm:$0xff] %v2181
      %2251 = vst [vmem:[%s172 + $0x40] sm:$0xff] %v2184
      %2252 = vst [vmem:[%s172 + $0x48] sm:$0xff] %v2186
      %2253 = vst [vmem:[%s172 + $0x50] sm:$0xff] %v2189
      %2254 = vst [vmem:[%s172 + $0x58] sm:$0xff] %v2191
      %2255 = vst [vmem:[%s172 + $0x60] sm:$0xff] %v2194
      %2256 = vst [vmem:[%s172 + $0x68] sm:$0xff] %v2196
      %2257 = vst [vmem:[%s172 + $0x70] sm:$0xff] %v2199
      %2258 = vst [vmem:[%s172 + $0x78] sm:$0xff] %v2201
      %2259 = vst [vmem:[%s172 + $0x80] sm:$0xff] %v2204
      %2260 = vst [vmem:[%s172 + $0x88] sm:$0xff] %v2206
      %2261 = vst [vmem:[%s172 + $0x90] sm:$0xff] %v2209
      %2262 = vst [vmem:[%s172 + $0x98] sm:$0xff] %v2211
      %2263 = vst [vmem:[%s172 + $0xa0] sm:$0xff] %v2214
      %2264 = vst [vmem:[%s172 + $0xa8] sm:$0xff] %v2216
      %2265 = vst [vmem:[%s172 + $0xb0] sm:$0xff] %v2219
      %2266 = vst [vmem:[%s172 + $0xb8] sm:$0xff] %v2221
      %2267 = vst [vmem:[%s172 + $0xc0] sm:$0xff] %v2224
      %2268 = vst [vmem:[%s172 + $0xc8] sm:$0xff] %v2226
      %2269 = vst [vmem:[%s172 + $0xd0] sm:$0xff] %v2229
      %2270 = vst [vmem:[%s172 + $0xd8] sm:$0xff] %v2231
      %2271 = vst [vmem:[%s172 + $0xe0] sm:$0xff] %v2234
      %2272 = vst [vmem:[%s172 + $0xe8] sm:$0xff] %v2236
      %2273 = vst [vmem:[%s172 + $0xf0] sm:$0xff] %v2239
      %2274 = vst [vmem:[%s172 + $0xf8] sm:$0xff] %v2241
      %s2275 = smul.u32 32, %s14
      %p2276 = scmp.lt.s32.totalorder %s2275, 63
      %s2277 = scalar_select %p2276, %s2275, 63
      %s2278 = smul.addr %s2277, 8
      %s2279 = scalar_lea.vmem %s3, %s2278
      // Predicated region
      $region33: #{_xnet_forward.1} parent=31 // pred_check
        %p2280 = pneg %p100
      $region34: #{_xnet_forward.1} parent=31 // pred_check_branch
        %2282 = sbr.rel (%p2280) target = $region36
      $region35: #{_xnet_forward.1} parent=31 // pred_region
        %s2283 = smul.u32 32, %s14
      $region36: #{_xnet_forward.1} parent=31 // pred_fallthru
        _
    $region32: #{_xnet_forward.1} parent=5 // pred_fallthru
      _
    %p2284 = scmp.le.s32.totalorder 2, %s9
    // Predicated region
    $region37: #{_xnet_forward.1} parent=5 // pred_check
      %p2285 = pneg %p2284
    $region38: #{_xnet_forward.1} parent=5 // pred_check_branch
      %2287 = sbr.rel (%p2285) target = $region40
    $region39: #{_xnet_forward.1} parent=5 // pred_region
      %s2288 = ssub.s32 %s9, 2
      // Predicated region
      $region41: #{_xnet_forward.1} parent=39 // pred_check
        %p2289 = pneg %p106
      $region42: #{_xnet_forward.1} parent=39 // pred_check_branch
        %2291 = sbr.rel (%p2289) target = $region44
      $region43: #{_xnet_forward.1} parent=39 // pred_region
        %s2292 = smul.u32 32, %s15
        %p2293 = scmp.lt.s32.totalorder %s2292, 63
        %s2294 = scalar_select %p2293, %s2292, 63
        %s2295 = smul.addr %s2294, 8
        %s2296 = scalar_lea.vmem %s3, %s2295
      $region44: #{_xnet_forward.1} parent=39 // pred_fallthru
        _
    $region40: #{_xnet_forward.1} parent=5 // pred_fallthru
      _
  $region6: #{_xnet_forward.1} parent=0 // loop_footer
    %s13 = sadd.s32 1, %s9
  $region7: #{_xnet_forward.1} parent=0 // loop_footer_branch
    %8 = sbr.rel target = $region3
  $region8: #{_xnet_forward.1} parent=0 // loop_exit
    _

</llo_original>
